<compile_context>
chip_gen: v5e
topology: v5e:2x2
jax: 0.10.0
libtpu: 0.0.40
codegen_flags: <defaults>
</compile_context>

<pallas_src>
import functools

import jax
import jax.numpy as jnp
from jax.experimental import pallas as pl
from jax.experimental.pallas import tpu as pltpu


def se_block_kernel(s_ref, w1_ref, b1_ref, x_ref, w2_ref, o_ref):
    # s_ref : (1, 84)     SE input, channels on lanes, f32
    # w1_ref: (336, 84)   conv2d102 weight (Cout, Cin), bf16  (full every step)
    # b1_ref: (336, 1)    conv2d102 bias, f32                  (full every step)
    # x_ref : (336, 196)  main activations (C, H*W), f32       (full every step)
    # w2_ref: (168, 336)  conv2d103 weight tile (Cout block, Cin), bf16
    # o_ref : (168, 196)  output tile
    s = jnp.maximum(s_ref[...], 0.0)                                   # ReLU (VPU)
    # 1x1 conv over 84 channels -> one scalar gate per channel of x.
    # Broadcast-mul + lane reduce (VPU+XLU); f32 accumulation via promotion.
    g = jnp.sum(w1_ref[...].astype(jnp.float32) * s, axis=1, keepdims=True) \
        + b1_ref[...]                                                  # (336, 1)
    # Exact sigmoid: exp on the EUP, exact divide (only 336 values -> free).
    gate = 1.0 / (1.0 + jnp.exp(-g))                                   # (336, 1)
    # Broadcast gate over the HW (lane) axis, cast to bf16 for the MXU.
    xg = (x_ref[...] * gate).astype(jnp.bfloat16)                      # (336, 196)
    # 1x1 conv, no bias: (168,336) @ (336,196), f32 accumulation on the MXU.
    o_ref[...] = jnp.dot(
        w2_ref[...], xg, preferred_element_type=jnp.float32
    ).astype(o_ref.dtype)


def prepare_weights(w1, b1, w2):
    """One-time (init) weight prep: drop the 1x1 spatial dims (free reshapes),
    cast both conv weights to bf16 so the per-call DMA shrinks (~282 KB -> ~141 KB
    for the weights); math still accumulates in f32 inside the kernel."""
    w1_bf16 = w1.reshape(w1.shape[0], w1.shape[1]).astype(jnp.bfloat16)  # (336, 84)
    b1_col = b1.reshape(-1, 1)                                           # (336, 1) f32
    w2_bf16 = w2.reshape(w2.shape[0], w2.shape[1]).astype(jnp.bfloat16)  # (336, 336)
    return w1_bf16, b1_col, w2_bf16


@functools.partial(jax.jit, static_argnames=("out_dtype",))
def se_block(x321, x319, w1_bf16, b1_col, w2_bf16, out_dtype=jnp.float32):
    """x321: (1, Cse, 1, 1); x319: (1, C, H, W) NCHW. Returns (1, C, H, W)."""
    N, C, H, W = x319.shape
    Cse = x321.shape[1]
    assert N == 1, "kernel written for batch=1 (as in the reference module)"
    HW = H * W

    # Output-channel tile: 2 blocks of 168 -> both v7x TensorCores; a short
    # 2-step loop on v6e/v5e (overlaps writeback of block 0 with block 1).
    CB = C // 2 if (C % 2 == 0 and (C // 2) % 8 == 0) else C
    grid = (C // CB,)

    s = x321.reshape(1, Cse)              # free reshape
    x_c_hw = x319.reshape(C, HW)          # free reshape (channels-first, N == 1)

    out_itemsize = jnp.dtype(out_dtype).itemsize
    cost = pl.CostEstimate(
        flops=2 * C * C * HW + 2 * C * Cse + C * HW,
        transcendentals=C,
        bytes_accessed=(Cse * 4 + C * Cse * 2 + C * 4 + C * HW * 4
                        + C * C * 2 + C * HW * out_itemsize),
    )

    out_flat = pl.pallas_call(
        se_block_kernel,
        out_shape=jax.ShapeDtypeStruct((C, HW), out_dtype),
        grid=grid,
        in_specs=[
            pl.BlockSpec((1, Cse), lambda i: (0, 0)),   # s    : full, fetched once/core
            pl.BlockSpec((C, Cse), lambda i: (0, 0)),   # w1   : full (gate needs all Cin)
            pl.BlockSpec((C, 1), lambda i: (0, 0)),     # b1   : full
            pl.BlockSpec((C, HW), lambda i: (0, 0)),    # x    : full
            pl.BlockSpec((CB, C), lambda i: (i, 0)),    # w2   : Cout-tiled
        ],
        out_specs=pl.BlockSpec((CB, HW), lambda i: (i, 0)),
        compiler_params=pltpu.CompilerParams(dimension_semantics=("parallel",)),
        cost_estimate=cost,
    )(s, w1_bf16, b1_col, x_c_hw, w2_bf16)

    return out_flat.reshape(N, C, H, W)   # free reshape back to NCHW


def reference(x321, x319, w1, b1, w2):
    """Pure-JAX f32 reference of the PyTorch forward (for sanity check)."""
    s = jnp.maximum(x321, 0.0)                                            # (1,84,1,1)
    g = jnp.einsum("nchw,oc->nohw", s, w1[:, :, 0, 0]) + b1[None, :, None, None]
    gate = jax.nn.sigmoid(g)                                              # (1,336,1,1)
    x = gate * x319                                                       # (1,336,14,14)
    return jnp.einsum("nchw,oc->nohw", x, w2[:, :, 0, 0])


if __name__ == "__main__":
    key = jax.random.PRNGKey(0)
    k1, k2, k3, k4, k5 = jax.random.split(key, 5)

    # shapes exactly as in the module __init__ / forward
    x321 = jax.random.normal(k1, (1, 84, 1, 1), dtype=jnp.float32)
    x319 = jax.random.normal(k2, (1, 336, 14, 14), dtype=jnp.float32)
    w1 = jax.random.normal(k3, (336, 84, 1, 1), dtype=jnp.float32) * 0.05   # conv2d102 weight
    b1 = jax.random.normal(k4, (336,), dtype=jnp.float32) * 0.05            # conv2d102 bias
    w2 = jax.random.normal(k5, (336, 336, 1, 1), dtype=jnp.float32) * 0.05  # conv2d103 weight

    # one-time weight preparation (init-time, outside the hot path)
    w1_bf16, b1_col, w2_bf16 = prepare_weights(w1, b1, w2)

    out = jax.block_until_ready(se_block(x321, x319, w1_bf16, b1_col, w2_bf16))
    ref = jax.block_until_ready(reference(x321, x319, w1, b1, w2))

    assert out.shape == (1, 336, 14, 14), out.shape
    # bf16 weights / bf16 gated activations (f32 accumulation) are now the only
    # error sources (sigmoid is exact), so tolerance tightened from 5e-2.
    assert jnp.allclose(out, ref, atol=2e-2, rtol=2e-2), float(jnp.max(jnp.abs(out - ref)))
    print("KERNEL_OK")
</pallas_src>

<mosaic_0001>
module attributes {stable_mosaic.version = 11 : i64} {
  func.func @se_block_kernel(%arg0: i32, %arg1: memref<1x84xf32, #tpu.memory_space<vmem>>, %arg2: memref<336x84xbf16, #tpu.memory_space<vmem>>, %arg3: memref<336x1xf32, #tpu.memory_space<vmem>>, %arg4: memref<336x196xf32, #tpu.memory_space<vmem>>, %arg5: memref<168x336xbf16, #tpu.memory_space<vmem>>, %arg6: memref<168x196xf32, #tpu.memory_space<vmem>>) attributes {dimension_semantics = [#tpu.dimension_semantics<parallel>], iteration_bounds = array<i64: 2>, scalar_prefetch = 0 : i64, scratch_operands = 0 : i64, tpu.core_type = #tpu.core_type<tc>, window_params = [{pipeline_mode = #tpu.pipeline_mode<synchronous>, transform_indices = @transform_0, window_bounds = array<i64: 1, 84>}, {pipeline_mode = #tpu.pipeline_mode<synchronous>, transform_indices = @transform_1, window_bounds = array<i64: 336, 84>}, {pipeline_mode = #tpu.pipeline_mode<synchronous>, transform_indices = @transform_2, window_bounds = array<i64: 336, 1>}, {pipeline_mode = #tpu.pipeline_mode<synchronous>, transform_indices = @transform_3, window_bounds = array<i64: 336, 196>}, {transform_indices = @transform_4, window_bounds = array<i64: 168, 336>}, {transform_indices = @transform_5, window_bounds = array<i64: 168, 196>}]} {
    %c0 = arith.constant 0 : index
    %c0_0 = arith.constant 0 : index
    %0 = vector.load %arg1[%c0, %c0_0] : memref<1x84xf32, #tpu.memory_space<vmem>>, vector<1x84xf32>
    %cst = arith.constant 0.000000e+00 : f32
    %1 = vector.broadcast %cst : f32 to vector<1x84xf32>
    %2 = arith.maximumf %0, %1 : vector<1x84xf32>
    %c0_1 = arith.constant 0 : index
    %c0_2 = arith.constant 0 : index
    %3 = vector.load %arg2[%c0_1, %c0_2] : memref<336x84xbf16, #tpu.memory_space<vmem>>, vector<336x84xbf16>
    %4 = arith.extf %3 : vector<336x84xbf16> to vector<336x84xf32>
    %5 = vector.broadcast %2 : vector<1x84xf32> to vector<336x84xf32>
    %6 = arith.mulf %4, %5 : vector<336x84xf32>
    %cst_3 = arith.constant dense<0.000000e+00> : vector<336xf32>
    %7 = vector.multi_reduction <add>, %6, %cst_3 [1] : vector<336x84xf32> to vector<336xf32>
    %8 = vector.shape_cast %7 : vector<336xf32> to vector<336x1xf32>
    %c0_4 = arith.constant 0 : index
    %c0_5 = arith.constant 0 : index
    %9 = vector.load %arg3[%c0_4, %c0_5] : memref<336x1xf32, #tpu.memory_space<vmem>>, vector<336x1xf32>
    %10 = arith.addf %8, %9 : vector<336x1xf32>
    %cst_6 = arith.constant 0.000000e+00 : f32
    %11 = vector.broadcast %cst_6 : f32 to vector<336x1xf32>
    %12 = arith.subf %11, %10 : vector<336x1xf32>
    %13 = math.exp %12 : vector<336x1xf32>
    %cst_7 = arith.constant 1.000000e+00 : f32
    %14 = vector.broadcast %cst_7 : f32 to vector<336x1xf32>
    %15 = arith.addf %14, %13 : vector<336x1xf32>
    %cst_8 = arith.constant 1.000000e+00 : f32
    %16 = vector.broadcast %cst_8 : f32 to vector<336x1xf32>
    %17 = arith.divf %16, %15 : vector<336x1xf32>
    %c0_9 = arith.constant 0 : index
    %c0_10 = arith.constant 0 : index
    %18 = vector.load %arg4[%c0_9, %c0_10] : memref<336x196xf32, #tpu.memory_space<vmem>>, vector<336x196xf32>
    %19 = vector.broadcast %17 : vector<336x1xf32> to vector<336x196xf32>
    %20 = arith.mulf %18, %19 : vector<336x196xf32>
    %21 = arith.truncf %20 : vector<336x196xf32> to vector<336x196xbf16>
    %c0_11 = arith.constant 0 : index
    %c0_12 = arith.constant 0 : index
    %22 = vector.load %arg5[%c0_11, %c0_12] : memref<168x336xbf16, #tpu.memory_space<vmem>>, vector<168x336xbf16>
    %cst_13 = arith.constant dense<0.000000e+00> : vector<168x196xf32>
    %23 = tpu.matmul %22, %21, %cst_13 {dimension_numbers = #tpu.dot_dimension_numbers<[1], [0], [0], [1], [0, 0, 1, 1], [], []>} : vector<168x336xbf16>, vector<336x196xbf16>, vector<168x196xf32> -> vector<168x196xf32>
    %c0_14 = arith.constant 0 : index
    %c0_15 = arith.constant 0 : index
    %24 = vector.load %arg6[%c0_14, %c0_15] : memref<168x196xf32, #tpu.memory_space<vmem>>, vector<168x196xf32>
    tpu.vector_store %arg6[%c0_14, %c0_15], %23 {strides = array<i32>} : memref<168x196xf32, #tpu.memory_space<vmem>>, vector<168x196xf32>,
    return
  }
  func.func @transform_0(%arg0: i32) -> (i32, i32) {
    %c0_i32 = arith.constant 0 : i32
    %c0_i32_0 = arith.constant 0 : i32
    %c0_i32_1 = arith.constant 0 : i32
    return %c0_i32, %c0_i32_0 : i32, i32
  }
  func.func @transform_1(%arg0: i32) -> (i32, i32) {
    %c0_i32 = arith.constant 0 : i32
    %c0_i32_0 = arith.constant 0 : i32
    %c0_i32_1 = arith.constant 0 : i32
    return %c0_i32, %c0_i32_0 : i32, i32
  }
  func.func @transform_2(%arg0: i32) -> (i32, i32) {
    %c0_i32 = arith.constant 0 : i32
    %c0_i32_0 = arith.constant 0 : i32
    %c0_i32_1 = arith.constant 0 : i32
    return %c0_i32, %c0_i32_0 : i32, i32
  }
  func.func @transform_3(%arg0: i32) -> (i32, i32) {
    %c0_i32 = arith.constant 0 : i32
    %c0_i32_0 = arith.constant 0 : i32
    %c0_i32_1 = arith.constant 0 : i32
    return %c0_i32, %c0_i32_0 : i32, i32
  }
  func.func @transform_4(%arg0: i32) -> (i32, i32) {
    %c0_i32 = arith.constant 0 : i32
    %c0_i32_0 = arith.constant 0 : i32
    return %arg0, %c0_i32 : i32, i32
  }
  func.func @transform_5(%arg0: i32) -> (i32, i32) {
    %c0_i32 = arith.constant 0 : i32
    %c0_i32_0 = arith.constant 0 : i32
    return %arg0, %c0_i32 : i32, i32
  }
}

</mosaic_0001>

<llo_original>
// kernel: se_block.1
$region0: #{se_block.1}
  #allocation0 [shape = 'u32[]', space=smem, size = 0x4, offset = 0x4, fixed_abs, tag = 'smem constant byte address 0x4 - core index']
  #allocation1 [shape = 'u32[72,128]{1,0:T(1,128)}', space=vmem, size = 0x9000, scoped, tag = 'internal scratch']
  %s0 = inlined_call_operand.vmem [shape: f32[1,84], index: 0, kind: input, shape index: {}]
  %s1 = inlined_call_operand.vmem [shape: bf16[336,84], index: 1, kind: input, shape index: {}]
  %s2 = inlined_call_operand.vmem [shape: f32[336,1], index: 2, kind: input, shape index: {}]
  %s3 = inlined_call_operand.vmem [shape: f32[336,196], index: 3, kind: input, shape index: {}]
  %s4 = inlined_call_operand.vmem [shape: bf16[336,336], index: 4, kind: input, shape index: {}]
  %s5 = inlined_call_operand.vmem [shape: f32[336,196], index: 5, kind: output, shape index: {}]
  %s6 = sld [smem:[#allocation0]]
  $region53: #{se_block.1} parent=0
    _
  %s8 = ssub.s32 1, %s6
  %s9 = scalar_select 0, %s8, %s6
  loop: start=0, step=1, limit=4
  $region2: #{se_block.1} parent=0 // loop_pre_header
    _
  $region3: #{se_block.1} parent=0 // loop_header
    %s11 = sphi 0, %s15
    %p12 = scmp.ge.s32.totalorder %s11, 4
    %s19 = sphi 0, %s19
    %s21 = sphi 0, %s19
    %s22 = sphi 0, %s21
    %s36 = sphi 0, %s22
    %s40 = sphi 0, %s40
    %s42 = sphi 0, %s40
    %s43 = sphi 0, %s42
    %s57 = sphi 0, %s43
    %s61 = sphi 0, %s61
    %s63 = sphi 0, %s61
    %s64 = sphi 0, %s63
    %s78 = sphi 0, %s64
    %s82 = sphi 0, %s82
    %s84 = sphi 0, %s82
    %s85 = sphi 0, %s84
    %s99 = sphi 0, %s85
    %s105 = sphi 0, %s107
    %s108 = sphi 0, %s105
    %s109 = sphi 0, %s108
    %s125 = sphi 0, %s109
    %s131 = sphi 0, %s133
    %s134 = sphi 0, %s131
    %s135 = sphi 0, %s134
    %s151 = sphi 0, %s135
  $region4: #{se_block.1} parent=0 // loop_header_branch
    %14 = sbr.rel (%p12) target = $region8
  $region5: #{se_block.1} parent=0 // loop_body
    %s16 = ssub.s32 %s11, 1
    %s17 = ssub.s32 %s11, 2
    %s18 = sadd.s32 %s11, 1
    %s20 = sadd.s32 %s19, 1
    %p23 = scmp.eq.s32.totalorder %s11, 1
    %p24 = scmp.ne.s32.totalorder %s19, %s21
    %p25 = scmp.eq.s32.totalorder %s11, 0
    %p26 = por %p24, %p25
    %p27 = scmp.ne.s32.totalorder %s19, %s21
    %p28 = scmp.eq.s32.totalorder %s16, 1
    %p29 = por %p27, %p28
    %p30 = scmp.ne.s32.totalorder %s21, %s22
    %p31 = scmp.eq.s32.totalorder %s16, 0
    %p32 = por %p30, %p31
    %p33 = scmp.ne.s32.totalorder %s21, %s22
    %p34 = scmp.eq.s32.totalorder %s17, 1
    %p35 = por %p33, %p34
    %p37 = scmp.ne.s32.totalorder %s22, %s36
    %p38 = scmp.eq.s32.totalorder %s17, 0
    %p39 = por %p37, %p38
    %s41 = sadd.s32 %s40, 1
    %p44 = scmp.eq.s32.totalorder %s11, 1
    %p45 = scmp.ne.s32.totalorder %s40, %s42
    %p46 = scmp.eq.s32.totalorder %s11, 0
    %p47 = por %p45, %p46
    %p48 = scmp.ne.s32.totalorder %s40, %s42
    %p49 = scmp.eq.s32.totalorder %s16, 1
    %p50 = por %p48, %p49
    %p51 = scmp.ne.s32.totalorder %s42, %s43
    %p52 = scmp.eq.s32.totalorder %s16, 0
    %p53 = por %p51, %p52
    %p54 = scmp.ne.s32.totalorder %s42, %s43
    %p55 = scmp.eq.s32.totalorder %s17, 1
    %p56 = por %p54, %p55
    %p58 = scmp.ne.s32.totalorder %s43, %s57
    %p59 = scmp.eq.s32.totalorder %s17, 0
    %p60 = por %p58, %p59
    %s62 = sadd.s32 %s61, 1
    %p65 = scmp.eq.s32.totalorder %s11, 1
    %p66 = scmp.ne.s32.totalorder %s61, %s63
    %p67 = scmp.eq.s32.totalorder %s11, 0
    %p68 = por %p66, %p67
    %p69 = scmp.ne.s32.totalorder %s61, %s63
    %p70 = scmp.eq.s32.totalorder %s16, 1
    %p71 = por %p69, %p70
    %p72 = scmp.ne.s32.totalorder %s63, %s64
    %p73 = scmp.eq.s32.totalorder %s16, 0
    %p74 = por %p72, %p73
    %p75 = scmp.ne.s32.totalorder %s63, %s64
    %p76 = scmp.eq.s32.totalorder %s17, 1
    %p77 = por %p75, %p76
    %p79 = scmp.ne.s32.totalorder %s64, %s78
    %p80 = scmp.eq.s32.totalorder %s17, 0
    %p81 = por %p79, %p80
    %s83 = sadd.s32 %s82, 1
    %p86 = scmp.eq.s32.totalorder %s11, 1
    %p87 = scmp.ne.s32.totalorder %s82, %s84
    %p88 = scmp.eq.s32.totalorder %s11, 0
    %p89 = por %p87, %p88
    %p90 = scmp.ne.s32.totalorder %s82, %s84
    %p91 = scmp.eq.s32.totalorder %s16, 1
    %p92 = por %p90, %p91
    %p93 = scmp.ne.s32.totalorder %s84, %s85
    %p94 = scmp.eq.s32.totalorder %s16, 0
    %p95 = por %p93, %p94
    %p96 = scmp.ne.s32.totalorder %s84, %s85
    %p97 = scmp.eq.s32.totalorder %s17, 1
    %p98 = por %p96, %p97
    %p100 = scmp.ne.s32.totalorder %s85, %s99
    %p101 = scmp.eq.s32.totalorder %s17, 0
    %p102 = por %p100, %p101
    %s103 = ssub.s32 %s11, %s18
    %p104 = scmp.eq.s32.totalorder %s103, 0
    %s106 = sadd.s32 %s105, 1
    %s107 = scalar_select %p104, %s105, %s106
    %p110 = pneg %p104
    %p111 = scmp.eq.s32.totalorder %s11, 1
    %p112 = por %p110, %p111
    %p113 = scmp.ne.s32.totalorder %s105, %s108
    %p114 = scmp.eq.s32.totalorder %s11, 0
    %p115 = por %p113, %p114
    %p116 = scmp.ne.s32.totalorder %s105, %s108
    %p117 = scmp.eq.s32.totalorder %s16, 1
    %p118 = por %p116, %p117
    %p119 = scmp.ne.s32.totalorder %s108, %s109
    %p120 = scmp.eq.s32.totalorder %s16, 0
    %p121 = por %p119, %p120
    %p122 = scmp.ne.s32.totalorder %s108, %s109
    %p123 = scmp.eq.s32.totalorder %s17, 1
    %p124 = por %p122, %p123
    %p126 = scmp.ne.s32.totalorder %s109, %s125
    %p127 = scmp.eq.s32.totalorder %s17, 0
    %p128 = por %p126, %p127
    %s129 = ssub.s32 %s11, %s18
    %p130 = scmp.eq.s32.totalorder %s129, 0
    %s132 = sadd.s32 %s131, 1
    %s133 = scalar_select %p130, %s131, %s132
    %p136 = pneg %p130
    %p137 = scmp.eq.s32.totalorder %s11, 1
    %p138 = por %p136, %p137
    %p139 = scmp.ne.s32.totalorder %s131, %s134
    %p140 = scmp.eq.s32.totalorder %s11, 0
    %p141 = por %p139, %p140
    %p142 = scmp.ne.s32.totalorder %s131, %s134
    %p143 = scmp.eq.s32.totalorder %s16, 1
    %p144 = por %p142, %p143
    %p145 = scmp.ne.s32.totalorder %s134, %s135
    %p146 = scmp.eq.s32.totalorder %s16, 0
    %p147 = por %p145, %p146
    %p148 = scmp.ne.s32.totalorder %s134, %s135
    %p149 = scmp.eq.s32.totalorder %s17, 1
    %p150 = por %p148, %p149
    %p152 = scmp.ne.s32.totalorder %s135, %s151
    %p153 = scmp.eq.s32.totalorder %s17, 0
    %p154 = por %p152, %p153
    %p155 = scmp.le.s32.totalorder 1, %s11
    %p156 = scmp.lt.s32.totalorder %s11, 3
    %p157 = pnand %p155, %p156
    %p158 = pneg %p157
    // Predicated region
    $region9: #{se_block.1} parent=5 // pred_check
      _
    $region10: #{se_block.1} parent=5 // pred_check_branch
      %160 = sbr.rel (%p157) target = $region12
    $region11: #{se_block.1} parent=5 // pred_region
      %s161 = ssub.s32 %s11, 1
      // Predicated region
      $region13: #{se_block.1} parent=11 // pred_check
        %p162 = pneg %p32
      $region14: #{se_block.1} parent=11 // pred_check_branch
        %164 = sbr.rel (%p162) target = $region16
      $region15: #{se_block.1} parent=11 // pred_region
        _
      $region16: #{se_block.1} parent=11 // pred_fallthru
        _
      // Predicated region
      $region17: #{se_block.1} parent=11 // pred_check
        %p165 = pneg %p53
      $region18: #{se_block.1} parent=11 // pred_check_branch
        %167 = sbr.rel (%p165) target = $region20
      $region19: #{se_block.1} parent=11 // pred_region
        _
      $region20: #{se_block.1} parent=11 // pred_fallthru
        _
      // Predicated region
      $region21: #{se_block.1} parent=11 // pred_check
        %p168 = pneg %p74
      $region22: #{se_block.1} parent=11 // pred_check_branch
        %170 = sbr.rel (%p168) target = $region24
      $region23: #{se_block.1} parent=11 // pred_region
        _
      $region24: #{se_block.1} parent=11 // pred_fallthru
        _
      // Predicated region
      $region25: #{se_block.1} parent=11 // pred_check
        %p171 = pneg %p95
      $region26: #{se_block.1} parent=11 // pred_check_branch
        %173 = sbr.rel (%p171) target = $region28
      $region27: #{se_block.1} parent=11 // pred_region
        _
      $region28: #{se_block.1} parent=11 // pred_fallthru
        _
    $region12: #{se_block.1} parent=5 // pred_fallthru
      _
    %p174 = scmp.lt.s32.totalorder %s11, 2
    // Predicated region
    $region29: #{se_block.1} parent=5 // pred_check
      %p175 = pneg %p174
    $region30: #{se_block.1} parent=5 // pred_check_branch
      %177 = sbr.rel (%p175) target = $region32
    $region31: #{se_block.1} parent=5 // pred_region
      // Predicated region
      $region33: #{se_block.1} parent=31 // pred_check
        %p178 = pneg %p115
      $region34: #{se_block.1} parent=31 // pred_check_branch
        %180 = sbr.rel (%p178) target = $region36
      $region35: #{se_block.1} parent=31 // pred_region
        %s181 = smul.u32 21, %s11
        %p182 = scmp.lt.s32.totalorder %s181, 41
        %s183 = scalar_select %p182, %s181, 41
        %s184 = smul.addr %s183, 3
        %s185 = smul.addr %s184, 4
        %s186 = scalar_lea.vmem %s4, %s185
        %s187 = smul.u32 21, %s11
      $region36: #{se_block.1} parent=31 // pred_fallthru
        _
    $region32: #{se_block.1} parent=5 // pred_fallthru
      _
    %p188 = scmp.le.s32.totalorder 1, %s11
    %p189 = scmp.lt.s32.totalorder %s11, 3
    %p190 = pnand %p188, %p189
    %p191 = pneg %p190
    // Predicated region
    $region37: #{se_block.1} parent=5 // pred_check
      _
    $region38: #{se_block.1} parent=5 // pred_check_branch
      %193 = sbr.rel (%p190) target = $region40
    $region39: #{se_block.1} parent=5 // pred_region
      %s194 = ssub.s32 %s11, 1
      %p195 = pneg %p32
      %p196 = pneg %p29
      %p197 = pneg %p53
      %p198 = pneg %p50
      %p199 = pneg %p74
      %p200 = pneg %p71
      %p201 = pneg %p95
      %p202 = pneg %p92
      %s203 = smul.u32 21, %s16
      %p204 = scmp.lt.s32.totalorder %s203, 41
      %s205 = scalar_select %p204, %s203, 41
      %s206 = smul.addr %s205, 3
      %s207 = smul.addr %s206, 4
      %s208 = scalar_lea.vmem %s4, %s207
      %p209 = pneg %p121
      %p210 = pneg %p118
      %p211 = pneg %p147
      %p212 = pneg %p144
      %s213 = smul.u32 21, %s16
      %p214 = scmp.lt.s32.totalorder %s213, 41
      %s215 = scalar_select %p214, %s213, 41
      %s216 = smul.addr %s215, 2
      %s217 = smul.addr %s216, 8
      %s218 = scalar_lea.vmem %s5, %s217
      %s219 = smul.u32 21, %s16
      %p220 = scmp.lt.s32.totalorder %s219, 41
      %s221 = scalar_select %p220, %s219, 41
      %s222 = smul.addr %s221, 3
      %s223 = smul.addr %s222, 4
      %s224 = scalar_lea.vmem %s4, %s223
      %s225 = smul.u32 21, %s16
      %s226 = smul.u32 21, %s16
      %p227 = scmp.lt.s32.totalorder %s226, 41
      %s228 = scalar_select %p227, %s226, 41
      %s229 = smul.addr %s228, 2
      %s230 = smul.addr %s229, 8
      %s231 = scalar_lea.vmem %s5, %s230
      %s232 = smul.u32 21, %s16
      %v234 = vld [vmem:[%s0] sm:$0x1]
      %v235 = vmax.f32 %v234, 0.0
      %v236 = vld [vmem:[%s1] sm:$0xf]
      %v237 = vld [vmem:[%s1 + $0x4] sm:$0xf]
      %v238 = vld [vmem:[%s1 + $0x8] sm:$0xf]
      %v239 = vld [vmem:[%s1 + $0xc] sm:$0xf]
      %v240 = vld [vmem:[%s1 + $0x10] sm:$0xf]
      %v241 = vld [vmem:[%s1 + $0x14] sm:$0xf]
      %v242 = vld [vmem:[%s1 + $0x18] sm:$0xf]
      %v243 = vld [vmem:[%s1 + $0x1c] sm:$0xf]
      %v244 = vld [vmem:[%s1 + $0x20] sm:$0xf]
      %v245 = vld [vmem:[%s1 + $0x24] sm:$0xf]
      %v246 = vld [vmem:[%s1 + $0x28] sm:$0xf]
      %v247 = vld [vmem:[%s1 + $0x2c] sm:$0xf]
      %v248 = vld [vmem:[%s1 + $0x30] sm:$0xf]
      %v249 = vld [vmem:[%s1 + $0x34] sm:$0xf]
      %v250 = vld [vmem:[%s1 + $0x38] sm:$0xf]
      %v251 = vld [vmem:[%s1 + $0x3c] sm:$0xf]
      %v252 = vld [vmem:[%s1 + $0x40] sm:$0xf]
      %v253 = vld [vmem:[%s1 + $0x44] sm:$0xf]
      %v254 = vld [vmem:[%s1 + $0x48] sm:$0xf]
      %v255 = vld [vmem:[%s1 + $0x4c] sm:$0xf]
      %v256 = vld [vmem:[%s1 + $0x50] sm:$0xf]
      %v257 = vld [vmem:[%s1 + $0x54] sm:$0xf]
      %v258 = vld [vmem:[%s1 + $0x58] sm:$0xf]
      %v259 = vld [vmem:[%s1 + $0x5c] sm:$0xf]
      %v260 = vld [vmem:[%s1 + $0x60] sm:$0xf]
      %v261 = vld [vmem:[%s1 + $0x64] sm:$0xf]
      %v262 = vld [vmem:[%s1 + $0x68] sm:$0xf]
      %v263 = vld [vmem:[%s1 + $0x6c] sm:$0xf]
      %v264 = vld [vmem:[%s1 + $0x70] sm:$0xf]
      %v265 = vld [vmem:[%s1 + $0x74] sm:$0xf]
      %v266 = vld [vmem:[%s1 + $0x78] sm:$0xf]
      %v267 = vld [vmem:[%s1 + $0x7c] sm:$0xf]
      %v268 = vld [vmem:[%s1 + $0x80] sm:$0xf]
      %v269 = vld [vmem:[%s1 + $0x84] sm:$0xf]
      %v270 = vld [vmem:[%s1 + $0x88] sm:$0xf]
      %v271 = vld [vmem:[%s1 + $0x8c] sm:$0xf]
      %v272 = vld [vmem:[%s1 + $0x90] sm:$0xf]
      %v273 = vld [vmem:[%s1 + $0x94] sm:$0xf]
      %v274 = vld [vmem:[%s1 + $0x98] sm:$0xf]
      %v275 = vld [vmem:[%s1 + $0x9c] sm:$0xf]
      %v276 = vld [vmem:[%s1 + $0xa0] sm:$0xf]
      %v277 = vld [vmem:[%s1 + $0xa4] sm:$0xf]
      %v278 = vunpack.c.l.bf16 %v236
      %v279 = vunpack.c.l.bf16 %v237
      %v280 = vunpack.c.l.bf16 %v238
      %v281 = vunpack.c.l.bf16 %v239
      %v282 = vunpack.c.l.bf16 %v240
      %v283 = vunpack.c.l.bf16 %v241
      %v284 = vunpack.c.l.bf16 %v242
      %v285 = vunpack.c.l.bf16 %v243
      %v286 = vunpack.c.l.bf16 %v244
      %v287 = vunpack.c.l.bf16 %v245
      %v288 = vunpack.c.l.bf16 %v246
      %v289 = vunpack.c.l.bf16 %v247
      %v290 = vunpack.c.l.bf16 %v248
      %v291 = vunpack.c.l.bf16 %v249
      %v292 = vunpack.c.l.bf16 %v250
      %v293 = vunpack.c.l.bf16 %v251
      %v294 = vunpack.c.l.bf16 %v252
      %v295 = vunpack.c.l.bf16 %v253
      %v296 = vunpack.c.l.bf16 %v254
      %v297 = vunpack.c.l.bf16 %v255
      %v298 = vunpack.c.l.bf16 %v256
      %v299 = vunpack.c.l.bf16 %v257
      %v300 = vunpack.c.l.bf16 %v258
      %v301 = vunpack.c.l.bf16 %v259
      %v302 = vunpack.c.l.bf16 %v260
      %v303 = vunpack.c.l.bf16 %v261
      %v304 = vunpack.c.l.bf16 %v262
      %v305 = vunpack.c.l.bf16 %v263
      %v306 = vunpack.c.l.bf16 %v264
      %v307 = vunpack.c.l.bf16 %v265
      %v308 = vunpack.c.l.bf16 %v266
      %v309 = vunpack.c.l.bf16 %v267
      %v310 = vunpack.c.l.bf16 %v268
      %v311 = vunpack.c.l.bf16 %v269
      %v312 = vunpack.c.l.bf16 %v270
      %v313 = vunpack.c.l.bf16 %v271
      %v314 = vunpack.c.l.bf16 %v272
      %v315 = vunpack.c.l.bf16 %v273
      %v316 = vunpack.c.l.bf16 %v274
      %v317 = vunpack.c.l.bf16 %v275
      %v318 = vunpack.c.l.bf16 %v276
      %v319 = vunpack.c.l.bf16 %v277
      %v321 = vperm.slane %v235, 0
      %v323 = vmul.f32 %v278, %v321
      %v324 = vmul.f32 %v279, %v321
      %v325 = vmul.f32 %v280, %v321
      %v326 = vmul.f32 %v281, %v321
      %v327 = vmul.f32 %v282, %v321
      %v328 = vmul.f32 %v283, %v321
      %v329 = vmul.f32 %v284, %v321
      %v330 = vmul.f32 %v285, %v321
      %v331 = vmul.f32 %v286, %v321
      %v332 = vmul.f32 %v287, %v321
      %v333 = vmul.f32 %v288, %v321
      %v334 = vmul.f32 %v289, %v321
      %v335 = vmul.f32 %v290, %v321
      %v336 = vmul.f32 %v291, %v321
      %v337 = vmul.f32 %v292, %v321
      %v338 = vmul.f32 %v293, %v321
      %v339 = vmul.f32 %v294, %v321
      %v340 = vmul.f32 %v295, %v321
      %v341 = vmul.f32 %v296, %v321
      %v342 = vmul.f32 %v297, %v321
      %v343 = vmul.f32 %v298, %v321
      %v344 = vmul.f32 %v299, %v321
      %v345 = vmul.f32 %v300, %v321
      %v346 = vmul.f32 %v301, %v321
      %v347 = vmul.f32 %v302, %v321
      %v348 = vmul.f32 %v303, %v321
      %v349 = vmul.f32 %v304, %v321
      %v350 = vmul.f32 %v305, %v321
      %v351 = vmul.f32 %v306, %v321
      %v352 = vmul.f32 %v307, %v321
      %v353 = vmul.f32 %v308, %v321
      %v354 = vmul.f32 %v309, %v321
      %v355 = vmul.f32 %v310, %v321
      %v356 = vmul.f32 %v311, %v321
      %v357 = vmul.f32 %v312, %v321
      %v358 = vmul.f32 %v313, %v321
      %v359 = vmul.f32 %v314, %v321
      %v360 = vmul.f32 %v315, %v321
      %v361 = vmul.f32 %v316, %v321
      %v362 = vmul.f32 %v317, %v321
      %v363 = vmul.f32 %v318, %v321
      %v364 = vmul.f32 %v319, %v321
      %vm365 = vcmask 687104
      %v366 = vsel %vm365, %v323, 0.0
      %367 = vadd.xlane.f32.xlu0 %v366
      %v368 = vpop.xlane.xlu0 %367
      %v369 = vsel %vm365, %v324, 0.0
      %370 = vadd.xlane.f32.xlu0 %v369
      %v371 = vpop.xlane.xlu0 %370
      %v372 = vsel %vm365, %v325, 0.0
      %373 = vadd.xlane.f32.xlu0 %v372
      %v374 = vpop.xlane.xlu0 %373
      %v375 = vsel %vm365, %v326, 0.0
      %376 = vadd.xlane.f32.xlu0 %v375
      %v377 = vpop.xlane.xlu0 %376
      %v378 = vsel %vm365, %v327, 0.0
      %379 = vadd.xlane.f32.xlu0 %v378
      %v380 = vpop.xlane.xlu0 %379
      %v381 = vsel %vm365, %v328, 0.0
      %382 = vadd.xlane.f32.xlu0 %v381
      %v383 = vpop.xlane.xlu0 %382
      %v384 = vsel %vm365, %v329, 0.0
      %385 = vadd.xlane.f32.xlu0 %v384
      %v386 = vpop.xlane.xlu0 %385
      %v387 = vsel %vm365, %v330, 0.0
      %388 = vadd.xlane.f32.xlu0 %v387
      %v389 = vpop.xlane.xlu0 %388
      %v390 = vsel %vm365, %v331, 0.0
      %391 = vadd.xlane.f32.xlu0 %v390
      %v392 = vpop.xlane.xlu0 %391
      %v393 = vsel %vm365, %v332, 0.0
      %394 = vadd.xlane.f32.xlu0 %v393
      %v395 = vpop.xlane.xlu0 %394
      %v396 = vsel %vm365, %v333, 0.0
      %397 = vadd.xlane.f32.xlu0 %v396
      %v398 = vpop.xlane.xlu0 %397
      %v399 = vsel %vm365, %v334, 0.0
      %400 = vadd.xlane.f32.xlu0 %v399
      %v401 = vpop.xlane.xlu0 %400
      %v402 = vsel %vm365, %v335, 0.0
      %403 = vadd.xlane.f32.xlu0 %v402
      %v404 = vpop.xlane.xlu0 %403
      %v405 = vsel %vm365, %v336, 0.0
      %406 = vadd.xlane.f32.xlu0 %v405
      %v407 = vpop.xlane.xlu0 %406
      %v408 = vsel %vm365, %v337, 0.0
      %409 = vadd.xlane.f32.xlu0 %v408
      %v410 = vpop.xlane.xlu0 %409
      %v411 = vsel %vm365, %v338, 0.0
      %412 = vadd.xlane.f32.xlu0 %v411
      %v413 = vpop.xlane.xlu0 %412
      %v414 = vsel %vm365, %v339, 0.0
      %415 = vadd.xlane.f32.xlu0 %v414
      %v416 = vpop.xlane.xlu0 %415
      %v417 = vsel %vm365, %v340, 0.0
      %418 = vadd.xlane.f32.xlu0 %v417
      %v419 = vpop.xlane.xlu0 %418
      %v420 = vsel %vm365, %v341, 0.0
      %421 = vadd.xlane.f32.xlu0 %v420
      %v422 = vpop.xlane.xlu0 %421
      %v423 = vsel %vm365, %v342, 0.0
      %424 = vadd.xlane.f32.xlu0 %v423
      %v425 = vpop.xlane.xlu0 %424
      %v426 = vsel %vm365, %v343, 0.0
      %427 = vadd.xlane.f32.xlu0 %v426
      %v428 = vpop.xlane.xlu0 %427
      %v429 = vsel %vm365, %v344, 0.0
      %430 = vadd.xlane.f32.xlu0 %v429
      %v431 = vpop.xlane.xlu0 %430
      %v432 = vsel %vm365, %v345, 0.0
      %433 = vadd.xlane.f32.xlu0 %v432
      %v434 = vpop.xlane.xlu0 %433
      %v435 = vsel %vm365, %v346, 0.0
      %436 = vadd.xlane.f32.xlu0 %v435
      %v437 = vpop.xlane.xlu0 %436
      %v438 = vsel %vm365, %v347, 0.0
      %439 = vadd.xlane.f32.xlu0 %v438
      %v440 = vpop.xlane.xlu0 %439
      %v441 = vsel %vm365, %v348, 0.0
      %442 = vadd.xlane.f32.xlu0 %v441
      %v443 = vpop.xlane.xlu0 %442
      %v444 = vsel %vm365, %v349, 0.0
      %445 = vadd.xlane.f32.xlu0 %v444
      %v446 = vpop.xlane.xlu0 %445
      %v447 = vsel %vm365, %v350, 0.0
      %448 = vadd.xlane.f32.xlu0 %v447
      %v449 = vpop.xlane.xlu0 %448
      %v450 = vsel %vm365, %v351, 0.0
      %451 = vadd.xlane.f32.xlu0 %v450
      %v452 = vpop.xlane.xlu0 %451
      %v453 = vsel %vm365, %v352, 0.0
      %454 = vadd.xlane.f32.xlu0 %v453
      %v455 = vpop.xlane.xlu0 %454
      %v456 = vsel %vm365, %v353, 0.0
      %457 = vadd.xlane.f32.xlu0 %v456
      %v458 = vpop.xlane.xlu0 %457
      %v459 = vsel %vm365, %v354, 0.0
      %460 = vadd.xlane.f32.xlu0 %v459
      %v461 = vpop.xlane.xlu0 %460
      %v462 = vsel %vm365, %v355, 0.0
      %463 = vadd.xlane.f32.xlu0 %v462
      %v464 = vpop.xlane.xlu0 %463
      %v465 = vsel %vm365, %v356, 0.0
      %466 = vadd.xlane.f32.xlu0 %v465
      %v467 = vpop.xlane.xlu0 %466
      %v468 = vsel %vm365, %v357, 0.0
      %469 = vadd.xlane.f32.xlu0 %v468
      %v470 = vpop.xlane.xlu0 %469
      %v471 = vsel %vm365, %v358, 0.0
      %472 = vadd.xlane.f32.xlu0 %v471
      %v473 = vpop.xlane.xlu0 %472
      %v474 = vsel %vm365, %v359, 0.0
      %475 = vadd.xlane.f32.xlu0 %v474
      %v476 = vpop.xlane.xlu0 %475
      %v477 = vsel %vm365, %v360, 0.0
      %478 = vadd.xlane.f32.xlu0 %v477
      %v479 = vpop.xlane.xlu0 %478
      %v480 = vsel %vm365, %v361, 0.0
      %481 = vadd.xlane.f32.xlu0 %v480
      %v482 = vpop.xlane.xlu0 %481
      %v483 = vsel %vm365, %v362, 0.0
      %484 = vadd.xlane.f32.xlu0 %v483
      %v485 = vpop.xlane.xlu0 %484
      %v486 = vsel %vm365, %v363, 0.0
      %487 = vadd.xlane.f32.xlu0 %v486
      %v488 = vpop.xlane.xlu0 %487
      %v489 = vsel %vm365, %v364, 0.0
      %490 = vadd.xlane.f32.xlu0 %v489
      %v491 = vpop.xlane.xlu0 %490
      %v492 = vld [vmem:[%s2] sm:$0xff]
      %v493 = vld [vmem:[%s2 + $0x8] sm:$0xff]
      %v494 = vld [vmem:[%s2 + $0x10] sm:$0xff]
      %v495 = vld [vmem:[%s2 + $0x18] sm:$0xff]
      %v496 = vld [vmem:[%s2 + $0x20] sm:$0xff]
      %v497 = vld [vmem:[%s2 + $0x28] sm:$0xff]
      %v498 = vld [vmem:[%s2 + $0x30] sm:$0xff]
      %v499 = vld [vmem:[%s2 + $0x38] sm:$0xff]
      %v500 = vld [vmem:[%s2 + $0x40] sm:$0xff]
      %v501 = vld [vmem:[%s2 + $0x48] sm:$0xff]
      %v502 = vld [vmem:[%s2 + $0x50] sm:$0xff]
      %v503 = vld [vmem:[%s2 + $0x58] sm:$0xff]
      %v504 = vld [vmem:[%s2 + $0x60] sm:$0xff]
      %v505 = vld [vmem:[%s2 + $0x68] sm:$0xff]
      %v506 = vld [vmem:[%s2 + $0x70] sm:$0xff]
      %v507 = vld [vmem:[%s2 + $0x78] sm:$0xff]
      %v508 = vld [vmem:[%s2 + $0x80] sm:$0xff]
      %v509 = vld [vmem:[%s2 + $0x88] sm:$0xff]
      %v510 = vld [vmem:[%s2 + $0x90] sm:$0xff]
      %v511 = vld [vmem:[%s2 + $0x98] sm:$0xff]
      %v512 = vld [vmem:[%s2 + $0xa0] sm:$0xff]
      %v513 = vld [vmem:[%s2 + $0xa8] sm:$0xff]
      %v514 = vld [vmem:[%s2 + $0xb0] sm:$0xff]
      %v515 = vld [vmem:[%s2 + $0xb8] sm:$0xff]
      %v516 = vld [vmem:[%s2 + $0xc0] sm:$0xff]
      %v517 = vld [vmem:[%s2 + $0xc8] sm:$0xff]
      %v518 = vld [vmem:[%s2 + $0xd0] sm:$0xff]
      %v519 = vld [vmem:[%s2 + $0xd8] sm:$0xff]
      %v520 = vld [vmem:[%s2 + $0xe0] sm:$0xff]
      %v521 = vld [vmem:[%s2 + $0xe8] sm:$0xff]
      %v522 = vld [vmem:[%s2 + $0xf0] sm:$0xff]
      %v523 = vld [vmem:[%s2 + $0xf8] sm:$0xff]
      %v524 = vld [vmem:[%s2 + $0x100] sm:$0xff]
      %v525 = vld [vmem:[%s2 + $0x108] sm:$0xff]
      %v526 = vld [vmem:[%s2 + $0x110] sm:$0xff]
      %v527 = vld [vmem:[%s2 + $0x118] sm:$0xff]
      %v528 = vld [vmem:[%s2 + $0x120] sm:$0xff]
      %v529 = vld [vmem:[%s2 + $0x128] sm:$0xff]
      %v530 = vld [vmem:[%s2 + $0x130] sm:$0xff]
      %v531 = vld [vmem:[%s2 + $0x138] sm:$0xff]
      %v532 = vld [vmem:[%s2 + $0x140] sm:$0xff]
      %v533 = vld [vmem:[%s2 + $0x148] sm:$0xff]
      %v534 = vadd.f32 %v368, %v492
      %v535 = vadd.f32 %v371, %v493
      %v536 = vadd.f32 %v374, %v494
      %v537 = vadd.f32 %v377, %v495
      %v538 = vadd.f32 %v380, %v496
      %v539 = vadd.f32 %v383, %v497
      %v540 = vadd.f32 %v386, %v498
      %v541 = vadd.f32 %v389, %v499
      %v542 = vadd.f32 %v392, %v500
      %v543 = vadd.f32 %v395, %v501
      %v544 = vadd.f32 %v398, %v502
      %v545 = vadd.f32 %v401, %v503
      %v546 = vadd.f32 %v404, %v504
      %v547 = vadd.f32 %v407, %v505
      %v548 = vadd.f32 %v410, %v506
      %v549 = vadd.f32 %v413, %v507
      %v550 = vadd.f32 %v416, %v508
      %v551 = vadd.f32 %v419, %v509
      %v552 = vadd.f32 %v422, %v510
      %v553 = vadd.f32 %v425, %v511
      %v554 = vadd.f32 %v428, %v512
      %v555 = vadd.f32 %v431, %v513
      %v556 = vadd.f32 %v434, %v514
      %v557 = vadd.f32 %v437, %v515
      %v558 = vadd.f32 %v440, %v516
      %v559 = vadd.f32 %v443, %v517
      %v560 = vadd.f32 %v446, %v518
      %v561 = vadd.f32 %v449, %v519
      %v562 = vadd.f32 %v452, %v520
      %v563 = vadd.f32 %v455, %v521
      %v564 = vadd.f32 %v458, %v522
      %v565 = vadd.f32 %v461, %v523
      %v566 = vadd.f32 %v464, %v524
      %v567 = vadd.f32 %v467, %v525
      %v568 = vadd.f32 %v470, %v526
      %v569 = vadd.f32 %v473, %v527
      %v570 = vadd.f32 %v476, %v528
      %v571 = vadd.f32 %v479, %v529
      %v572 = vadd.f32 %v482, %v530
      %v573 = vadd.f32 %v485, %v531
      %v574 = vadd.f32 %v488, %v532
      %v575 = vadd.f32 %v491, %v533
      %v576 = vsub.f32 0.0, %v534
      %v577 = vsub.f32 0.0, %v535
      %v578 = vsub.f32 0.0, %v536
      %v579 = vsub.f32 0.0, %v537
      %v580 = vsub.f32 0.0, %v538
      %v581 = vsub.f32 0.0, %v539
      %v582 = vsub.f32 0.0, %v540
      %v583 = vsub.f32 0.0, %v541
      %v584 = vsub.f32 0.0, %v542
      %v585 = vsub.f32 0.0, %v543
      %v586 = vsub.f32 0.0, %v544
      %v587 = vsub.f32 0.0, %v545
      %v588 = vsub.f32 0.0, %v546
      %v589 = vsub.f32 0.0, %v547
      %v590 = vsub.f32 0.0, %v548
      %v591 = vsub.f32 0.0, %v549
      %v592 = vsub.f32 0.0, %v550
      %v593 = vsub.f32 0.0, %v551
      %v594 = vsub.f32 0.0, %v552
      %v595 = vsub.f32 0.0, %v553
      %v596 = vsub.f32 0.0, %v554
      %v597 = vsub.f32 0.0, %v555
      %v598 = vsub.f32 0.0, %v556
      %v599 = vsub.f32 0.0, %v557
      %v600 = vsub.f32 0.0, %v558
      %v601 = vsub.f32 0.0, %v559
      %v602 = vsub.f32 0.0, %v560
      %v603 = vsub.f32 0.0, %v561
      %v604 = vsub.f32 0.0, %v562
      %v605 = vsub.f32 0.0, %v563
      %v606 = vsub.f32 0.0, %v564
      %v607 = vsub.f32 0.0, %v565
      %v608 = vsub.f32 0.0, %v566
      %v609 = vsub.f32 0.0, %v567
      %v610 = vsub.f32 0.0, %v568
      %v611 = vsub.f32 0.0, %v569
      %v612 = vsub.f32 0.0, %v570
      %v613 = vsub.f32 0.0, %v571
      %v614 = vsub.f32 0.0, %v572
      %v615 = vsub.f32 0.0, %v573
      %v616 = vsub.f32 0.0, %v574
      %v617 = vsub.f32 0.0, %v575
      %v618 = vmul.f32 %v576, 1.442695
      %v619 = vpow.pop %v618
      %v620 = vmul.f32 %v577, 1.442695
      %v621 = vpow.pop %v620
      %v622 = vmul.f32 %v578, 1.442695
      %v623 = vpow.pop %v622
      %v624 = vmul.f32 %v579, 1.442695
      %v625 = vpow.pop %v624
      %v626 = vmul.f32 %v580, 1.442695
      %v627 = vpow.pop %v626
      %v628 = vmul.f32 %v581, 1.442695
      %v629 = vpow.pop %v628
      %v630 = vmul.f32 %v582, 1.442695
      %v631 = vpow.pop %v630
      %v632 = vmul.f32 %v583, 1.442695
      %v633 = vpow.pop %v632
      %v634 = vmul.f32 %v584, 1.442695
      %v635 = vpow.pop %v634
      %v636 = vmul.f32 %v585, 1.442695
      %v637 = vpow.pop %v636
      %v638 = vmul.f32 %v586, 1.442695
      %v639 = vpow.pop %v638
      %v640 = vmul.f32 %v587, 1.442695
      %v641 = vpow.pop %v640
      %v642 = vmul.f32 %v588, 1.442695
      %v643 = vpow.pop %v642
      %v644 = vmul.f32 %v589, 1.442695
      %v645 = vpow.pop %v644
      %v646 = vmul.f32 %v590, 1.442695
      %v647 = vpow.pop %v646
      %v648 = vmul.f32 %v591, 1.442695
      %v649 = vpow.pop %v648
      %v650 = vmul.f32 %v592, 1.442695
      %v651 = vpow.pop %v650
      %v652 = vmul.f32 %v593, 1.442695
      %v653 = vpow.pop %v652
      %v654 = vmul.f32 %v594, 1.442695
      %v655 = vpow.pop %v654
      %v656 = vmul.f32 %v595, 1.442695
      %v657 = vpow.pop %v656
      %v658 = vmul.f32 %v596, 1.442695
      %v659 = vpow.pop %v658
      %v660 = vmul.f32 %v597, 1.442695
      %v661 = vpow.pop %v660
      %v662 = vmul.f32 %v598, 1.442695
      %v663 = vpow.pop %v662
      %v664 = vmul.f32 %v599, 1.442695
      %v665 = vpow.pop %v664
      %v666 = vmul.f32 %v600, 1.442695
      %v667 = vpow.pop %v666
      %v668 = vmul.f32 %v601, 1.442695
      %v669 = vpow.pop %v668
      %v670 = vmul.f32 %v602, 1.442695
      %v671 = vpow.pop %v670
      %v672 = vmul.f32 %v603, 1.442695
      %v673 = vpow.pop %v672
      %v674 = vmul.f32 %v604, 1.442695
      %v675 = vpow.pop %v674
      %v676 = vmul.f32 %v605, 1.442695
      %v677 = vpow.pop %v676
      %v678 = vmul.f32 %v606, 1.442695
      %v679 = vpow.pop %v678
      %v680 = vmul.f32 %v607, 1.442695
      %v681 = vpow.pop %v680
      %v682 = vmul.f32 %v608, 1.442695
      %v683 = vpow.pop %v682
      %v684 = vmul.f32 %v609, 1.442695
      %v685 = vpow.pop %v684
      %v686 = vmul.f32 %v610, 1.442695
      %v687 = vpow.pop %v686
      %v688 = vmul.f32 %v611, 1.442695
      %v689 = vpow.pop %v688
      %v690 = vmul.f32 %v612, 1.442695
      %v691 = vpow.pop %v690
      %v692 = vmul.f32 %v613, 1.442695
      %v693 = vpow.pop %v692
      %v694 = vmul.f32 %v614, 1.442695
      %v695 = vpow.pop %v694
      %v696 = vmul.f32 %v615, 1.442695
      %v697 = vpow.pop %v696
      %v698 = vmul.f32 %v616, 1.442695
      %v699 = vpow.pop %v698
      %v700 = vmul.f32 %v617, 1.442695
      %v701 = vpow.pop %v700
      %v702 = vadd.f32 %v619, 1.0
      %v703 = vadd.f32 %v621, 1.0
      %v704 = vadd.f32 %v623, 1.0
      %v705 = vadd.f32 %v625, 1.0
      %v706 = vadd.f32 %v627, 1.0
      %v707 = vadd.f32 %v629, 1.0
      %v708 = vadd.f32 %v631, 1.0
      %v709 = vadd.f32 %v633, 1.0
      %v710 = vadd.f32 %v635, 1.0
      %v711 = vadd.f32 %v637, 1.0
      %v712 = vadd.f32 %v639, 1.0
      %v713 = vadd.f32 %v641, 1.0
      %v714 = vadd.f32 %v643, 1.0
      %v715 = vadd.f32 %v645, 1.0
      %v716 = vadd.f32 %v647, 1.0
      %v717 = vadd.f32 %v649, 1.0
      %v718 = vadd.f32 %v651, 1.0
      %v719 = vadd.f32 %v653, 1.0
      %v720 = vadd.f32 %v655, 1.0
      %v721 = vadd.f32 %v657, 1.0
      %v722 = vadd.f32 %v659, 1.0
      %v723 = vadd.f32 %v661, 1.0
      %v724 = vadd.f32 %v663, 1.0
      %v725 = vadd.f32 %v665, 1.0
      %v726 = vadd.f32 %v667, 1.0
      %v727 = vadd.f32 %v669, 1.0
      %v728 = vadd.f32 %v671, 1.0
      %v729 = vadd.f32 %v673, 1.0
      %v730 = vadd.f32 %v675, 1.0
      %v731 = vadd.f32 %v677, 1.0
      %v732 = vadd.f32 %v679, 1.0
      %v733 = vadd.f32 %v681, 1.0
      %v734 = vadd.f32 %v683, 1.0
      %v735 = vadd.f32 %v685, 1.0
      %v736 = vadd.f32 %v687, 1.0
      %v737 = vadd.f32 %v689, 1.0
      %v738 = vadd.f32 %v691, 1.0
      %v739 = vadd.f32 %v693, 1.0
      %v740 = vadd.f32 %v695, 1.0
      %v741 = vadd.f32 %v697, 1.0
      %v742 = vadd.f32 %v699, 1.0
      %v743 = vadd.f32 %v701, 1.0
      %v744 = vrcp.pop %v702
      %v745 = vmul.f32 %v702, %v744
      %v746 = vsub.f32 1.0, %v745
      %v747 = vmul.f32 %v744, %v746
      %v748 = vadd.f32 %v744, %v747
      %vm749 = vweird.f32 %v702
      %vm750 = vweird.f32 %v744
      %vm751 = vmor %vm749, %vm750
      %v752 = vsel %vm751, %v744, %v748
      %v753 = vand.u32 2147483647, %v702
      %vm754 = vcmp.eq.f32.partialorder %v753, 8.507059e+37
      %v755 = vand.u32 %v702, 2147483648
      %v756 = vor.u32 1.1754944e-38, %v755
      %v757 = vsel %vm754, %v756, %v752
      %v758 = vmul.f32 1.0, %v757
      %v759 = vrcp.pop %v703
      %v760 = vmul.f32 %v703, %v759
      %v761 = vsub.f32 1.0, %v760
      %v762 = vmul.f32 %v759, %v761
      %v763 = vadd.f32 %v759, %v762
      %vm764 = vweird.f32 %v703
      %vm765 = vweird.f32 %v759
      %vm766 = vmor %vm764, %vm765
      %v767 = vsel %vm766, %v759, %v763
      %v768 = vand.u32 2147483647, %v703
      %vm769 = vcmp.eq.f32.partialorder %v768, 8.507059e+37
      %v770 = vand.u32 %v703, 2147483648
      %v771 = vor.u32 1.1754944e-38, %v770
      %v772 = vsel %vm769, %v771, %v767
      %v773 = vmul.f32 1.0, %v772
      %v774 = vrcp.pop %v704
      %v775 = vmul.f32 %v704, %v774
      %v776 = vsub.f32 1.0, %v775
      %v777 = vmul.f32 %v774, %v776
      %v778 = vadd.f32 %v774, %v777
      %vm779 = vweird.f32 %v704
      %vm780 = vweird.f32 %v774
      %vm781 = vmor %vm779, %vm780
      %v782 = vsel %vm781, %v774, %v778
      %v783 = vand.u32 2147483647, %v704
      %vm784 = vcmp.eq.f32.partialorder %v783, 8.507059e+37
      %v785 = vand.u32 %v704, 2147483648
      %v786 = vor.u32 1.1754944e-38, %v785
      %v787 = vsel %vm784, %v786, %v782
      %v788 = vmul.f32 1.0, %v787
      %v789 = vrcp.pop %v705
      %v790 = vmul.f32 %v705, %v789
      %v791 = vsub.f32 1.0, %v790
      %v792 = vmul.f32 %v789, %v791
      %v793 = vadd.f32 %v789, %v792
      %vm794 = vweird.f32 %v705
      %vm795 = vweird.f32 %v789
      %vm796 = vmor %vm794, %vm795
      %v797 = vsel %vm796, %v789, %v793
      %v798 = vand.u32 2147483647, %v705
      %vm799 = vcmp.eq.f32.partialorder %v798, 8.507059e+37
      %v800 = vand.u32 %v705, 2147483648
      %v801 = vor.u32 1.1754944e-38, %v800
      %v802 = vsel %vm799, %v801, %v797
      %v803 = vmul.f32 1.0, %v802
      %v804 = vrcp.pop %v706
      %v805 = vmul.f32 %v706, %v804
      %v806 = vsub.f32 1.0, %v805
      %v807 = vmul.f32 %v804, %v806
      %v808 = vadd.f32 %v804, %v807
      %vm809 = vweird.f32 %v706
      %vm810 = vweird.f32 %v804
      %vm811 = vmor %vm809, %vm810
      %v812 = vsel %vm811, %v804, %v808
      %v813 = vand.u32 2147483647, %v706
      %vm814 = vcmp.eq.f32.partialorder %v813, 8.507059e+37
      %v815 = vand.u32 %v706, 2147483648
      %v816 = vor.u32 1.1754944e-38, %v815
      %v817 = vsel %vm814, %v816, %v812
      %v818 = vmul.f32 1.0, %v817
      %v819 = vrcp.pop %v707
      %v820 = vmul.f32 %v707, %v819
      %v821 = vsub.f32 1.0, %v820
      %v822 = vmul.f32 %v819, %v821
      %v823 = vadd.f32 %v819, %v822
      %vm824 = vweird.f32 %v707
      %vm825 = vweird.f32 %v819
      %vm826 = vmor %vm824, %vm825
      %v827 = vsel %vm826, %v819, %v823
      %v828 = vand.u32 2147483647, %v707
      %vm829 = vcmp.eq.f32.partialorder %v828, 8.507059e+37
      %v830 = vand.u32 %v707, 2147483648
      %v831 = vor.u32 1.1754944e-38, %v830
      %v832 = vsel %vm829, %v831, %v827
      %v833 = vmul.f32 1.0, %v832
      %v834 = vrcp.pop %v708
      %v835 = vmul.f32 %v708, %v834
      %v836 = vsub.f32 1.0, %v835
      %v837 = vmul.f32 %v834, %v836
      %v838 = vadd.f32 %v834, %v837
      %vm839 = vweird.f32 %v708
      %vm840 = vweird.f32 %v834
      %vm841 = vmor %vm839, %vm840
      %v842 = vsel %vm841, %v834, %v838
      %v843 = vand.u32 2147483647, %v708
      %vm844 = vcmp.eq.f32.partialorder %v843, 8.507059e+37
      %v845 = vand.u32 %v708, 2147483648
      %v846 = vor.u32 1.1754944e-38, %v845
      %v847 = vsel %vm844, %v846, %v842
      %v848 = vmul.f32 1.0, %v847
      %v849 = vrcp.pop %v709
      %v850 = vmul.f32 %v709, %v849
      %v851 = vsub.f32 1.0, %v850
      %v852 = vmul.f32 %v849, %v851
      %v853 = vadd.f32 %v849, %v852
      %vm854 = vweird.f32 %v709
      %vm855 = vweird.f32 %v849
      %vm856 = vmor %vm854, %vm855
      %v857 = vsel %vm856, %v849, %v853
      %v858 = vand.u32 2147483647, %v709
      %vm859 = vcmp.eq.f32.partialorder %v858, 8.507059e+37
      %v860 = vand.u32 %v709, 2147483648
      %v861 = vor.u32 1.1754944e-38, %v860
      %v862 = vsel %vm859, %v861, %v857
      %v863 = vmul.f32 1.0, %v862
      %v864 = vrcp.pop %v710
      %v865 = vmul.f32 %v710, %v864
      %v866 = vsub.f32 1.0, %v865
      %v867 = vmul.f32 %v864, %v866
      %v868 = vadd.f32 %v864, %v867
      %vm869 = vweird.f32 %v710
      %vm870 = vweird.f32 %v864
      %vm871 = vmor %vm869, %vm870
      %v872 = vsel %vm871, %v864, %v868
      %v873 = vand.u32 2147483647, %v710
      %vm874 = vcmp.eq.f32.partialorder %v873, 8.507059e+37
      %v875 = vand.u32 %v710, 2147483648
      %v876 = vor.u32 1.1754944e-38, %v875
      %v877 = vsel %vm874, %v876, %v872
      %v878 = vmul.f32 1.0, %v877
      %v879 = vrcp.pop %v711
      %v880 = vmul.f32 %v711, %v879
      %v881 = vsub.f32 1.0, %v880
      %v882 = vmul.f32 %v879, %v881
      %v883 = vadd.f32 %v879, %v882
      %vm884 = vweird.f32 %v711
      %vm885 = vweird.f32 %v879
      %vm886 = vmor %vm884, %vm885
      %v887 = vsel %vm886, %v879, %v883
      %v888 = vand.u32 2147483647, %v711
      %vm889 = vcmp.eq.f32.partialorder %v888, 8.507059e+37
      %v890 = vand.u32 %v711, 2147483648
      %v891 = vor.u32 1.1754944e-38, %v890
      %v892 = vsel %vm889, %v891, %v887
      %v893 = vmul.f32 1.0, %v892
      %v894 = vrcp.pop %v712
      %v895 = vmul.f32 %v712, %v894
      %v896 = vsub.f32 1.0, %v895
      %v897 = vmul.f32 %v894, %v896
      %v898 = vadd.f32 %v894, %v897
      %vm899 = vweird.f32 %v712
      %vm900 = vweird.f32 %v894
      %vm901 = vmor %vm899, %vm900
      %v902 = vsel %vm901, %v894, %v898
      %v903 = vand.u32 2147483647, %v712
      %vm904 = vcmp.eq.f32.partialorder %v903, 8.507059e+37
      %v905 = vand.u32 %v712, 2147483648
      %v906 = vor.u32 1.1754944e-38, %v905
      %v907 = vsel %vm904, %v906, %v902
      %v908 = vmul.f32 1.0, %v907
      %v909 = vrcp.pop %v713
      %v910 = vmul.f32 %v713, %v909
      %v911 = vsub.f32 1.0, %v910
      %v912 = vmul.f32 %v909, %v911
      %v913 = vadd.f32 %v909, %v912
      %vm914 = vweird.f32 %v713
      %vm915 = vweird.f32 %v909
      %vm916 = vmor %vm914, %vm915
      %v917 = vsel %vm916, %v909, %v913
      %v918 = vand.u32 2147483647, %v713
      %vm919 = vcmp.eq.f32.partialorder %v918, 8.507059e+37
      %v920 = vand.u32 %v713, 2147483648
      %v921 = vor.u32 1.1754944e-38, %v920
      %v922 = vsel %vm919, %v921, %v917
      %v923 = vmul.f32 1.0, %v922
      %v924 = vrcp.pop %v714
      %v925 = vmul.f32 %v714, %v924
      %v926 = vsub.f32 1.0, %v925
      %v927 = vmul.f32 %v924, %v926
      %v928 = vadd.f32 %v924, %v927
      %vm929 = vweird.f32 %v714
      %vm930 = vweird.f32 %v924
      %vm931 = vmor %vm929, %vm930
      %v932 = vsel %vm931, %v924, %v928
      %v933 = vand.u32 2147483647, %v714
      %vm934 = vcmp.eq.f32.partialorder %v933, 8.507059e+37
      %v935 = vand.u32 %v714, 2147483648
      %v936 = vor.u32 1.1754944e-38, %v935
      %v937 = vsel %vm934, %v936, %v932
      %v938 = vmul.f32 1.0, %v937
      %v939 = vrcp.pop %v715
      %v940 = vmul.f32 %v715, %v939
      %v941 = vsub.f32 1.0, %v940
      %v942 = vmul.f32 %v939, %v941
      %v943 = vadd.f32 %v939, %v942
      %vm944 = vweird.f32 %v715
      %vm945 = vweird.f32 %v939
      %vm946 = vmor %vm944, %vm945
      %v947 = vsel %vm946, %v939, %v943
      %v948 = vand.u32 2147483647, %v715
      %vm949 = vcmp.eq.f32.partialorder %v948, 8.507059e+37
      %v950 = vand.u32 %v715, 2147483648
      %v951 = vor.u32 1.1754944e-38, %v950
      %v952 = vsel %vm949, %v951, %v947
      %v953 = vmul.f32 1.0, %v952
      %v954 = vrcp.pop %v716
      %v955 = vmul.f32 %v716, %v954
      %v956 = vsub.f32 1.0, %v955
      %v957 = vmul.f32 %v954, %v956
      %v958 = vadd.f32 %v954, %v957
      %vm959 = vweird.f32 %v716
      %vm960 = vweird.f32 %v954
      %vm961 = vmor %vm959, %vm960
      %v962 = vsel %vm961, %v954, %v958
      %v963 = vand.u32 2147483647, %v716
      %vm964 = vcmp.eq.f32.partialorder %v963, 8.507059e+37
      %v965 = vand.u32 %v716, 2147483648
      %v966 = vor.u32 1.1754944e-38, %v965
      %v967 = vsel %vm964, %v966, %v962
      %v968 = vmul.f32 1.0, %v967
      %v969 = vrcp.pop %v717
      %v970 = vmul.f32 %v717, %v969
      %v971 = vsub.f32 1.0, %v970
      %v972 = vmul.f32 %v969, %v971
      %v973 = vadd.f32 %v969, %v972
      %vm974 = vweird.f32 %v717
      %vm975 = vweird.f32 %v969
      %vm976 = vmor %vm974, %vm975
      %v977 = vsel %vm976, %v969, %v973
      %v978 = vand.u32 2147483647, %v717
      %vm979 = vcmp.eq.f32.partialorder %v978, 8.507059e+37
      %v980 = vand.u32 %v717, 2147483648
      %v981 = vor.u32 1.1754944e-38, %v980
      %v982 = vsel %vm979, %v981, %v977
      %v983 = vmul.f32 1.0, %v982
      %v984 = vrcp.pop %v718
      %v985 = vmul.f32 %v718, %v984
      %v986 = vsub.f32 1.0, %v985
      %v987 = vmul.f32 %v984, %v986
      %v988 = vadd.f32 %v984, %v987
      %vm989 = vweird.f32 %v718
      %vm990 = vweird.f32 %v984
      %vm991 = vmor %vm989, %vm990
      %v992 = vsel %vm991, %v984, %v988
      %v993 = vand.u32 2147483647, %v718
      %vm994 = vcmp.eq.f32.partialorder %v993, 8.507059e+37
      %v995 = vand.u32 %v718, 2147483648
      %v996 = vor.u32 1.1754944e-38, %v995
      %v997 = vsel %vm994, %v996, %v992
      %v998 = vmul.f32 1.0, %v997
      %v999 = vrcp.pop %v719
      %v1000 = vmul.f32 %v719, %v999
      %v1001 = vsub.f32 1.0, %v1000
      %v1002 = vmul.f32 %v999, %v1001
      %v1003 = vadd.f32 %v999, %v1002
      %vm1004 = vweird.f32 %v719
      %vm1005 = vweird.f32 %v999
      %vm1006 = vmor %vm1004, %vm1005
      %v1007 = vsel %vm1006, %v999, %v1003
      %v1008 = vand.u32 2147483647, %v719
      %vm1009 = vcmp.eq.f32.partialorder %v1008, 8.507059e+37
      %v1010 = vand.u32 %v719, 2147483648
      %v1011 = vor.u32 1.1754944e-38, %v1010
      %v1012 = vsel %vm1009, %v1011, %v1007
      %v1013 = vmul.f32 1.0, %v1012
      %v1014 = vrcp.pop %v720
      %v1015 = vmul.f32 %v720, %v1014
      %v1016 = vsub.f32 1.0, %v1015
      %v1017 = vmul.f32 %v1014, %v1016
      %v1018 = vadd.f32 %v1014, %v1017
      %vm1019 = vweird.f32 %v720
      %vm1020 = vweird.f32 %v1014
      %vm1021 = vmor %vm1019, %vm1020
      %v1022 = vsel %vm1021, %v1014, %v1018
      %v1023 = vand.u32 2147483647, %v720
      %vm1024 = vcmp.eq.f32.partialorder %v1023, 8.507059e+37
      %v1025 = vand.u32 %v720, 2147483648
      %v1026 = vor.u32 1.1754944e-38, %v1025
      %v1027 = vsel %vm1024, %v1026, %v1022
      %v1028 = vmul.f32 1.0, %v1027
      %v1029 = vrcp.pop %v721
      %v1030 = vmul.f32 %v721, %v1029
      %v1031 = vsub.f32 1.0, %v1030
      %v1032 = vmul.f32 %v1029, %v1031
      %v1033 = vadd.f32 %v1029, %v1032
      %vm1034 = vweird.f32 %v721
      %vm1035 = vweird.f32 %v1029
      %vm1036 = vmor %vm1034, %vm1035
      %v1037 = vsel %vm1036, %v1029, %v1033
      %v1038 = vand.u32 2147483647, %v721
      %vm1039 = vcmp.eq.f32.partialorder %v1038, 8.507059e+37
      %v1040 = vand.u32 %v721, 2147483648
      %v1041 = vor.u32 1.1754944e-38, %v1040
      %v1042 = vsel %vm1039, %v1041, %v1037
      %v1043 = vmul.f32 1.0, %v1042
      %v1044 = vrcp.pop %v722
      %v1045 = vmul.f32 %v722, %v1044
      %v1046 = vsub.f32 1.0, %v1045
      %v1047 = vmul.f32 %v1044, %v1046
      %v1048 = vadd.f32 %v1044, %v1047
      %vm1049 = vweird.f32 %v722
      %vm1050 = vweird.f32 %v1044
      %vm1051 = vmor %vm1049, %vm1050
      %v1052 = vsel %vm1051, %v1044, %v1048
      %v1053 = vand.u32 2147483647, %v722
      %vm1054 = vcmp.eq.f32.partialorder %v1053, 8.507059e+37
      %v1055 = vand.u32 %v722, 2147483648
      %v1056 = vor.u32 1.1754944e-38, %v1055
      %v1057 = vsel %vm1054, %v1056, %v1052
      %v1058 = vmul.f32 1.0, %v1057
      %v1059 = vrcp.pop %v723
      %v1060 = vmul.f32 %v723, %v1059
      %v1061 = vsub.f32 1.0, %v1060
      %v1062 = vmul.f32 %v1059, %v1061
      %v1063 = vadd.f32 %v1059, %v1062
      %vm1064 = vweird.f32 %v723
      %vm1065 = vweird.f32 %v1059
      %vm1066 = vmor %vm1064, %vm1065
      %v1067 = vsel %vm1066, %v1059, %v1063
      %v1068 = vand.u32 2147483647, %v723
      %vm1069 = vcmp.eq.f32.partialorder %v1068, 8.507059e+37
      %v1070 = vand.u32 %v723, 2147483648
      %v1071 = vor.u32 1.1754944e-38, %v1070
      %v1072 = vsel %vm1069, %v1071, %v1067
      %v1073 = vmul.f32 1.0, %v1072
      %v1074 = vrcp.pop %v724
      %v1075 = vmul.f32 %v724, %v1074
      %v1076 = vsub.f32 1.0, %v1075
      %v1077 = vmul.f32 %v1074, %v1076
      %v1078 = vadd.f32 %v1074, %v1077
      %vm1079 = vweird.f32 %v724
      %vm1080 = vweird.f32 %v1074
      %vm1081 = vmor %vm1079, %vm1080
      %v1082 = vsel %vm1081, %v1074, %v1078
      %v1083 = vand.u32 2147483647, %v724
      %vm1084 = vcmp.eq.f32.partialorder %v1083, 8.507059e+37
      %v1085 = vand.u32 %v724, 2147483648
      %v1086 = vor.u32 1.1754944e-38, %v1085
      %v1087 = vsel %vm1084, %v1086, %v1082
      %v1088 = vmul.f32 1.0, %v1087
      %v1089 = vrcp.pop %v725
      %v1090 = vmul.f32 %v725, %v1089
      %v1091 = vsub.f32 1.0, %v1090
      %v1092 = vmul.f32 %v1089, %v1091
      %v1093 = vadd.f32 %v1089, %v1092
      %vm1094 = vweird.f32 %v725
      %vm1095 = vweird.f32 %v1089
      %vm1096 = vmor %vm1094, %vm1095
      %v1097 = vsel %vm1096, %v1089, %v1093
      %v1098 = vand.u32 2147483647, %v725
      %vm1099 = vcmp.eq.f32.partialorder %v1098, 8.507059e+37
      %v1100 = vand.u32 %v725, 2147483648
      %v1101 = vor.u32 1.1754944e-38, %v1100
      %v1102 = vsel %vm1099, %v1101, %v1097
      %v1103 = vmul.f32 1.0, %v1102
      %v1104 = vrcp.pop %v726
      %v1105 = vmul.f32 %v726, %v1104
      %v1106 = vsub.f32 1.0, %v1105
      %v1107 = vmul.f32 %v1104, %v1106
      %v1108 = vadd.f32 %v1104, %v1107
      %vm1109 = vweird.f32 %v726
      %vm1110 = vweird.f32 %v1104
      %vm1111 = vmor %vm1109, %vm1110
      %v1112 = vsel %vm1111, %v1104, %v1108
      %v1113 = vand.u32 2147483647, %v726
      %vm1114 = vcmp.eq.f32.partialorder %v1113, 8.507059e+37
      %v1115 = vand.u32 %v726, 2147483648
      %v1116 = vor.u32 1.1754944e-38, %v1115
      %v1117 = vsel %vm1114, %v1116, %v1112
      %v1118 = vmul.f32 1.0, %v1117
      %v1119 = vrcp.pop %v727
      %v1120 = vmul.f32 %v727, %v1119
      %v1121 = vsub.f32 1.0, %v1120
      %v1122 = vmul.f32 %v1119, %v1121
      %v1123 = vadd.f32 %v1119, %v1122
      %vm1124 = vweird.f32 %v727
      %vm1125 = vweird.f32 %v1119
      %vm1126 = vmor %vm1124, %vm1125
      %v1127 = vsel %vm1126, %v1119, %v1123
      %v1128 = vand.u32 2147483647, %v727
      %vm1129 = vcmp.eq.f32.partialorder %v1128, 8.507059e+37
      %v1130 = vand.u32 %v727, 2147483648
      %v1131 = vor.u32 1.1754944e-38, %v1130
      %v1132 = vsel %vm1129, %v1131, %v1127
      %v1133 = vmul.f32 1.0, %v1132
      %v1134 = vrcp.pop %v728
      %v1135 = vmul.f32 %v728, %v1134
      %v1136 = vsub.f32 1.0, %v1135
      %v1137 = vmul.f32 %v1134, %v1136
      %v1138 = vadd.f32 %v1134, %v1137
      %vm1139 = vweird.f32 %v728
      %vm1140 = vweird.f32 %v1134
      %vm1141 = vmor %vm1139, %vm1140
      %v1142 = vsel %vm1141, %v1134, %v1138
      %v1143 = vand.u32 2147483647, %v728
      %vm1144 = vcmp.eq.f32.partialorder %v1143, 8.507059e+37
      %v1145 = vand.u32 %v728, 2147483648
      %v1146 = vor.u32 1.1754944e-38, %v1145
      %v1147 = vsel %vm1144, %v1146, %v1142
      %v1148 = vmul.f32 1.0, %v1147
      %v1149 = vrcp.pop %v729
      %v1150 = vmul.f32 %v729, %v1149
      %v1151 = vsub.f32 1.0, %v1150
      %v1152 = vmul.f32 %v1149, %v1151
      %v1153 = vadd.f32 %v1149, %v1152
      %vm1154 = vweird.f32 %v729
      %vm1155 = vweird.f32 %v1149
      %vm1156 = vmor %vm1154, %vm1155
      %v1157 = vsel %vm1156, %v1149, %v1153
      %v1158 = vand.u32 2147483647, %v729
      %vm1159 = vcmp.eq.f32.partialorder %v1158, 8.507059e+37
      %v1160 = vand.u32 %v729, 2147483648
      %v1161 = vor.u32 1.1754944e-38, %v1160
      %v1162 = vsel %vm1159, %v1161, %v1157
      %v1163 = vmul.f32 1.0, %v1162
      %v1164 = vrcp.pop %v730
      %v1165 = vmul.f32 %v730, %v1164
      %v1166 = vsub.f32 1.0, %v1165
      %v1167 = vmul.f32 %v1164, %v1166
      %v1168 = vadd.f32 %v1164, %v1167
      %vm1169 = vweird.f32 %v730
      %vm1170 = vweird.f32 %v1164
      %vm1171 = vmor %vm1169, %vm1170
      %v1172 = vsel %vm1171, %v1164, %v1168
      %v1173 = vand.u32 2147483647, %v730
      %vm1174 = vcmp.eq.f32.partialorder %v1173, 8.507059e+37
      %v1175 = vand.u32 %v730, 2147483648
      %v1176 = vor.u32 1.1754944e-38, %v1175
      %v1177 = vsel %vm1174, %v1176, %v1172
      %v1178 = vmul.f32 1.0, %v1177
      %v1179 = vrcp.pop %v731
      %v1180 = vmul.f32 %v731, %v1179
      %v1181 = vsub.f32 1.0, %v1180
      %v1182 = vmul.f32 %v1179, %v1181
      %v1183 = vadd.f32 %v1179, %v1182
      %vm1184 = vweird.f32 %v731
      %vm1185 = vweird.f32 %v1179
      %vm1186 = vmor %vm1184, %vm1185
      %v1187 = vsel %vm1186, %v1179, %v1183
      %v1188 = vand.u32 2147483647, %v731
      %vm1189 = vcmp.eq.f32.partialorder %v1188, 8.507059e+37
      %v1190 = vand.u32 %v731, 2147483648
      %v1191 = vor.u32 1.1754944e-38, %v1190
      %v1192 = vsel %vm1189, %v1191, %v1187
      %v1193 = vmul.f32 1.0, %v1192
      %v1194 = vrcp.pop %v732
      %v1195 = vmul.f32 %v732, %v1194
      %v1196 = vsub.f32 1.0, %v1195
      %v1197 = vmul.f32 %v1194, %v1196
      %v1198 = vadd.f32 %v1194, %v1197
      %vm1199 = vweird.f32 %v732
      %vm1200 = vweird.f32 %v1194
      %vm1201 = vmor %vm1199, %vm1200
      %v1202 = vsel %vm1201, %v1194, %v1198
      %v1203 = vand.u32 2147483647, %v732
      %vm1204 = vcmp.eq.f32.partialorder %v1203, 8.507059e+37
      %v1205 = vand.u32 %v732, 2147483648
      %v1206 = vor.u32 1.1754944e-38, %v1205
      %v1207 = vsel %vm1204, %v1206, %v1202
      %v1208 = vmul.f32 1.0, %v1207
      %v1209 = vrcp.pop %v733
      %v1210 = vmul.f32 %v733, %v1209
      %v1211 = vsub.f32 1.0, %v1210
      %v1212 = vmul.f32 %v1209, %v1211
      %v1213 = vadd.f32 %v1209, %v1212
      %vm1214 = vweird.f32 %v733
      %vm1215 = vweird.f32 %v1209
      %vm1216 = vmor %vm1214, %vm1215
      %v1217 = vsel %vm1216, %v1209, %v1213
      %v1218 = vand.u32 2147483647, %v733
      %vm1219 = vcmp.eq.f32.partialorder %v1218, 8.507059e+37
      %v1220 = vand.u32 %v733, 2147483648
      %v1221 = vor.u32 1.1754944e-38, %v1220
      %v1222 = vsel %vm1219, %v1221, %v1217
      %v1223 = vmul.f32 1.0, %v1222
      %v1224 = vrcp.pop %v734
      %v1225 = vmul.f32 %v734, %v1224
      %v1226 = vsub.f32 1.0, %v1225
      %v1227 = vmul.f32 %v1224, %v1226
      %v1228 = vadd.f32 %v1224, %v1227
      %vm1229 = vweird.f32 %v734
      %vm1230 = vweird.f32 %v1224
      %vm1231 = vmor %vm1229, %vm1230
      %v1232 = vsel %vm1231, %v1224, %v1228
      %v1233 = vand.u32 2147483647, %v734
      %vm1234 = vcmp.eq.f32.partialorder %v1233, 8.507059e+37
      %v1235 = vand.u32 %v734, 2147483648
      %v1236 = vor.u32 1.1754944e-38, %v1235
      %v1237 = vsel %vm1234, %v1236, %v1232
      %v1238 = vmul.f32 1.0, %v1237
      %v1239 = vrcp.pop %v735
      %v1240 = vmul.f32 %v735, %v1239
      %v1241 = vsub.f32 1.0, %v1240
      %v1242 = vmul.f32 %v1239, %v1241
      %v1243 = vadd.f32 %v1239, %v1242
      %vm1244 = vweird.f32 %v735
      %vm1245 = vweird.f32 %v1239
      %vm1246 = vmor %vm1244, %vm1245
      %v1247 = vsel %vm1246, %v1239, %v1243
      %v1248 = vand.u32 2147483647, %v735
      %vm1249 = vcmp.eq.f32.partialorder %v1248, 8.507059e+37
      %v1250 = vand.u32 %v735, 2147483648
      %v1251 = vor.u32 1.1754944e-38, %v1250
      %v1252 = vsel %vm1249, %v1251, %v1247
      %v1253 = vmul.f32 1.0, %v1252
      %v1254 = vrcp.pop %v736
      %v1255 = vmul.f32 %v736, %v1254
      %v1256 = vsub.f32 1.0, %v1255
      %v1257 = vmul.f32 %v1254, %v1256
      %v1258 = vadd.f32 %v1254, %v1257
      %vm1259 = vweird.f32 %v736
      %vm1260 = vweird.f32 %v1254
      %vm1261 = vmor %vm1259, %vm1260
      %v1262 = vsel %vm1261, %v1254, %v1258
      %v1263 = vand.u32 2147483647, %v736
      %vm1264 = vcmp.eq.f32.partialorder %v1263, 8.507059e+37
      %v1265 = vand.u32 %v736, 2147483648
      %v1266 = vor.u32 1.1754944e-38, %v1265
      %v1267 = vsel %vm1264, %v1266, %v1262
      %v1268 = vmul.f32 1.0, %v1267
      %v1269 = vrcp.pop %v737
      %v1270 = vmul.f32 %v737, %v1269
      %v1271 = vsub.f32 1.0, %v1270
      %v1272 = vmul.f32 %v1269, %v1271
      %v1273 = vadd.f32 %v1269, %v1272
      %vm1274 = vweird.f32 %v737
      %vm1275 = vweird.f32 %v1269
      %vm1276 = vmor %vm1274, %vm1275
      %v1277 = vsel %vm1276, %v1269, %v1273
      %v1278 = vand.u32 2147483647, %v737
      %vm1279 = vcmp.eq.f32.partialorder %v1278, 8.507059e+37
      %v1280 = vand.u32 %v737, 2147483648
      %v1281 = vor.u32 1.1754944e-38, %v1280
      %v1282 = vsel %vm1279, %v1281, %v1277
      %v1283 = vmul.f32 1.0, %v1282
      %v1284 = vrcp.pop %v738
      %v1285 = vmul.f32 %v738, %v1284
      %v1286 = vsub.f32 1.0, %v1285
      %v1287 = vmul.f32 %v1284, %v1286
      %v1288 = vadd.f32 %v1284, %v1287
      %vm1289 = vweird.f32 %v738
      %vm1290 = vweird.f32 %v1284
      %vm1291 = vmor %vm1289, %vm1290
      %v1292 = vsel %vm1291, %v1284, %v1288
      %v1293 = vand.u32 2147483647, %v738
      %vm1294 = vcmp.eq.f32.partialorder %v1293, 8.507059e+37
      %v1295 = vand.u32 %v738, 2147483648
      %v1296 = vor.u32 1.1754944e-38, %v1295
      %v1297 = vsel %vm1294, %v1296, %v1292
      %v1298 = vmul.f32 1.0, %v1297
      %v1299 = vrcp.pop %v739
      %v1300 = vmul.f32 %v739, %v1299
      %v1301 = vsub.f32 1.0, %v1300
      %v1302 = vmul.f32 %v1299, %v1301
      %v1303 = vadd.f32 %v1299, %v1302
      %vm1304 = vweird.f32 %v739
      %vm1305 = vweird.f32 %v1299
      %vm1306 = vmor %vm1304, %vm1305
      %v1307 = vsel %vm1306, %v1299, %v1303
      %v1308 = vand.u32 2147483647, %v739
      %vm1309 = vcmp.eq.f32.partialorder %v1308, 8.507059e+37
      %v1310 = vand.u32 %v739, 2147483648
      %v1311 = vor.u32 1.1754944e-38, %v1310
      %v1312 = vsel %vm1309, %v1311, %v1307
      %v1313 = vmul.f32 1.0, %v1312
      %v1314 = vrcp.pop %v740
      %v1315 = vmul.f32 %v740, %v1314
      %v1316 = vsub.f32 1.0, %v1315
      %v1317 = vmul.f32 %v1314, %v1316
      %v1318 = vadd.f32 %v1314, %v1317
      %vm1319 = vweird.f32 %v740
      %vm1320 = vweird.f32 %v1314
      %vm1321 = vmor %vm1319, %vm1320
      %v1322 = vsel %vm1321, %v1314, %v1318
      %v1323 = vand.u32 2147483647, %v740
      %vm1324 = vcmp.eq.f32.partialorder %v1323, 8.507059e+37
      %v1325 = vand.u32 %v740, 2147483648
      %v1326 = vor.u32 1.1754944e-38, %v1325
      %v1327 = vsel %vm1324, %v1326, %v1322
      %v1328 = vmul.f32 1.0, %v1327
      %v1329 = vrcp.pop %v741
      %v1330 = vmul.f32 %v741, %v1329
      %v1331 = vsub.f32 1.0, %v1330
      %v1332 = vmul.f32 %v1329, %v1331
      %v1333 = vadd.f32 %v1329, %v1332
      %vm1334 = vweird.f32 %v741
      %vm1335 = vweird.f32 %v1329
      %vm1336 = vmor %vm1334, %vm1335
      %v1337 = vsel %vm1336, %v1329, %v1333
      %v1338 = vand.u32 2147483647, %v741
      %vm1339 = vcmp.eq.f32.partialorder %v1338, 8.507059e+37
      %v1340 = vand.u32 %v741, 2147483648
      %v1341 = vor.u32 1.1754944e-38, %v1340
      %v1342 = vsel %vm1339, %v1341, %v1337
      %v1343 = vmul.f32 1.0, %v1342
      %v1344 = vrcp.pop %v742
      %v1345 = vmul.f32 %v742, %v1344
      %v1346 = vsub.f32 1.0, %v1345
      %v1347 = vmul.f32 %v1344, %v1346
      %v1348 = vadd.f32 %v1344, %v1347
      %vm1349 = vweird.f32 %v742
      %vm1350 = vweird.f32 %v1344
      %vm1351 = vmor %vm1349, %vm1350
      %v1352 = vsel %vm1351, %v1344, %v1348
      %v1353 = vand.u32 2147483647, %v742
      %vm1354 = vcmp.eq.f32.partialorder %v1353, 8.507059e+37
      %v1355 = vand.u32 %v742, 2147483648
      %v1356 = vor.u32 1.1754944e-38, %v1355
      %v1357 = vsel %vm1354, %v1356, %v1352
      %v1358 = vmul.f32 1.0, %v1357
      %v1359 = vrcp.pop %v743
      %v1360 = vmul.f32 %v743, %v1359
      %v1361 = vsub.f32 1.0, %v1360
      %v1362 = vmul.f32 %v1359, %v1361
      %v1363 = vadd.f32 %v1359, %v1362
      %vm1364 = vweird.f32 %v743
      %vm1365 = vweird.f32 %v1359
      %vm1366 = vmor %vm1364, %vm1365
      %v1367 = vsel %vm1366, %v1359, %v1363
      %v1368 = vand.u32 2147483647, %v743
      %vm1369 = vcmp.eq.f32.partialorder %v1368, 8.507059e+37
      %v1370 = vand.u32 %v743, 2147483648
      %v1371 = vor.u32 1.1754944e-38, %v1370
      %v1372 = vsel %vm1369, %v1371, %v1367
      %v1373 = vmul.f32 1.0, %v1372
      %v1374 = vld [vmem:[%s3] sm:$0xff]
      %v1375 = vld [vmem:[%s3 + $0x8] sm:$0xff]
      %v1376 = vld [vmem:[%s3 + $0x10] sm:$0xff]
      %v1377 = vld [vmem:[%s3 + $0x18] sm:$0xff]
      %v1378 = vld [vmem:[%s3 + $0x20] sm:$0xff]
      %v1379 = vld [vmem:[%s3 + $0x28] sm:$0xff]
      %v1380 = vld [vmem:[%s3 + $0x30] sm:$0xff]
      %v1381 = vld [vmem:[%s3 + $0x38] sm:$0xff]
      %v1382 = vld [vmem:[%s3 + $0x40] sm:$0xff]
      %v1383 = vld [vmem:[%s3 + $0x48] sm:$0xff]
      %v1384 = vld [vmem:[%s3 + $0x50] sm:$0xff]
      %v1385 = vld [vmem:[%s3 + $0x58] sm:$0xff]
      %v1386 = vld [vmem:[%s3 + $0x60] sm:$0xff]
      %v1387 = vld [vmem:[%s3 + $0x68] sm:$0xff]
      %v1388 = vld [vmem:[%s3 + $0x70] sm:$0xff]
      %v1389 = vld [vmem:[%s3 + $0x78] sm:$0xff]
      %v1390 = vld [vmem:[%s3 + $0x80] sm:$0xff]
      %v1391 = vld [vmem:[%s3 + $0x88] sm:$0xff]
      %v1392 = vld [vmem:[%s3 + $0x90] sm:$0xff]
      %v1393 = vld [vmem:[%s3 + $0x98] sm:$0xff]
      %v1394 = vld [vmem:[%s3 + $0xa0] sm:$0xff]
      %v1395 = vld [vmem:[%s3 + $0xa8] sm:$0xff]
      %v1396 = vld [vmem:[%s3 + $0xb0] sm:$0xff]
      %v1397 = vld [vmem:[%s3 + $0xb8] sm:$0xff]
      %v1398 = vld [vmem:[%s3 + $0xc0] sm:$0xff]
      %v1399 = vld [vmem:[%s3 + $0xc8] sm:$0xff]
      %v1400 = vld [vmem:[%s3 + $0xd0] sm:$0xff]
      %v1401 = vld [vmem:[%s3 + $0xd8] sm:$0xff]
      %v1402 = vld [vmem:[%s3 + $0xe0] sm:$0xff]
      %v1403 = vld [vmem:[%s3 + $0xe8] sm:$0xff]
      %v1404 = vld [vmem:[%s3 + $0xf0] sm:$0xff]
      %v1405 = vld [vmem:[%s3 + $0xf8] sm:$0xff]
      %v1406 = vld [vmem:[%s3 + $0x100] sm:$0xff]
      %v1407 = vld [vmem:[%s3 + $0x108] sm:$0xff]
      %v1408 = vld [vmem:[%s3 + $0x110] sm:$0xff]
      %v1409 = vld [vmem:[%s3 + $0x118] sm:$0xff]
      %v1410 = vld [vmem:[%s3 + $0x120] sm:$0xff]
      %v1411 = vld [vmem:[%s3 + $0x128] sm:$0xff]
      %v1412 = vld [vmem:[%s3 + $0x130] sm:$0xff]
      %v1413 = vld [vmem:[%s3 + $0x138] sm:$0xff]
      %v1414 = vld [vmem:[%s3 + $0x140] sm:$0xff]
      %v1415 = vld [vmem:[%s3 + $0x148] sm:$0xff]
      %v1416 = vld [vmem:[%s3 + $0x150] sm:$0xff]
      %v1417 = vld [vmem:[%s3 + $0x158] sm:$0xff]
      %v1418 = vld [vmem:[%s3 + $0x160] sm:$0xff]
      %v1419 = vld [vmem:[%s3 + $0x168] sm:$0xff]
      %v1420 = vld [vmem:[%s3 + $0x170] sm:$0xff]
      %v1421 = vld [vmem:[%s3 + $0x178] sm:$0xff]
      %v1422 = vld [vmem:[%s3 + $0x180] sm:$0xff]
      %v1423 = vld [vmem:[%s3 + $0x188] sm:$0xff]
      %v1424 = vld [vmem:[%s3 + $0x190] sm:$0xff]
      %v1425 = vld [vmem:[%s3 + $0x198] sm:$0xff]
      %v1426 = vld [vmem:[%s3 + $0x1a0] sm:$0xff]
      %v1427 = vld [vmem:[%s3 + $0x1a8] sm:$0xff]
      %v1428 = vld [vmem:[%s3 + $0x1b0] sm:$0xff]
      %v1429 = vld [vmem:[%s3 + $0x1b8] sm:$0xff]
      %v1430 = vld [vmem:[%s3 + $0x1c0] sm:$0xff]
      %v1431 = vld [vmem:[%s3 + $0x1c8] sm:$0xff]
      %v1432 = vld [vmem:[%s3 + $0x1d0] sm:$0xff]
      %v1433 = vld [vmem:[%s3 + $0x1d8] sm:$0xff]
      %v1434 = vld [vmem:[%s3 + $0x1e0] sm:$0xff]
      %v1435 = vld [vmem:[%s3 + $0x1e8] sm:$0xff]
      %v1436 = vld [vmem:[%s3 + $0x1f0] sm:$0xff]
      %v1437 = vld [vmem:[%s3 + $0x1f8] sm:$0xff]
      %v1438 = vld [vmem:[%s3 + $0x200] sm:$0xff]
      %v1439 = vld [vmem:[%s3 + $0x208] sm:$0xff]
      %v1440 = vld [vmem:[%s3 + $0x210] sm:$0xff]
      %v1441 = vld [vmem:[%s3 + $0x218] sm:$0xff]
      %v1442 = vld [vmem:[%s3 + $0x220] sm:$0xff]
      %v1443 = vld [vmem:[%s3 + $0x228] sm:$0xff]
      %v1444 = vld [vmem:[%s3 + $0x230] sm:$0xff]
      %v1445 = vld [vmem:[%s3 + $0x238] sm:$0xff]
      %v1446 = vld [vmem:[%s3 + $0x240] sm:$0xff]
      %v1447 = vld [vmem:[%s3 + $0x248] sm:$0xff]
      %v1448 = vld [vmem:[%s3 + $0x250] sm:$0xff]
      %v1449 = vld [vmem:[%s3 + $0x258] sm:$0xff]
      %v1450 = vld [vmem:[%s3 + $0x260] sm:$0xff]
      %v1451 = vld [vmem:[%s3 + $0x268] sm:$0xff]
      %v1452 = vld [vmem:[%s3 + $0x270] sm:$0xff]
      %v1453 = vld [vmem:[%s3 + $0x278] sm:$0xff]
      %v1454 = vld [vmem:[%s3 + $0x280] sm:$0xff]
      %v1455 = vld [vmem:[%s3 + $0x288] sm:$0xff]
      %v1456 = vld [vmem:[%s3 + $0x290] sm:$0xff]
      %v1457 = vld [vmem:[%s3 + $0x298] sm:$0xff]
      %1459 = vset.pattern.permute.xlu0 0
      %1460 = vperm.xlu0 %1459, %v758
      %v1461 = vpop.permute.xlu0 %1460
      %1464 = vset.pattern.permute.xlu0 0
      %1465 = vperm.xlu0 %1464, %v773
      %v1466 = vpop.permute.xlu0 %1465
      %1469 = vset.pattern.permute.xlu0 0
      %1470 = vperm.xlu0 %1469, %v788
      %v1471 = vpop.permute.xlu0 %1470
      %1474 = vset.pattern.permute.xlu0 0
      %1475 = vperm.xlu0 %1474, %v803
      %v1476 = vpop.permute.xlu0 %1475
      %1479 = vset.pattern.permute.xlu0 0
      %1480 = vperm.xlu0 %1479, %v818
      %v1481 = vpop.permute.xlu0 %1480
      %1484 = vset.pattern.permute.xlu0 0
      %1485 = vperm.xlu0 %1484, %v833
      %v1486 = vpop.permute.xlu0 %1485
      %1489 = vset.pattern.permute.xlu0 0
      %1490 = vperm.xlu0 %1489, %v848
      %v1491 = vpop.permute.xlu0 %1490
      %1494 = vset.pattern.permute.xlu0 0
      %1495 = vperm.xlu0 %1494, %v863
      %v1496 = vpop.permute.xlu0 %1495
      %1499 = vset.pattern.permute.xlu0 0
      %1500 = vperm.xlu0 %1499, %v878
      %v1501 = vpop.permute.xlu0 %1500
      %1504 = vset.pattern.permute.xlu0 0
      %1505 = vperm.xlu0 %1504, %v893
      %v1506 = vpop.permute.xlu0 %1505
      %1509 = vset.pattern.permute.xlu0 0
      %1510 = vperm.xlu0 %1509, %v908
      %v1511 = vpop.permute.xlu0 %1510
      %1514 = vset.pattern.permute.xlu0 0
      %1515 = vperm.xlu0 %1514, %v923
      %v1516 = vpop.permute.xlu0 %1515
      %1519 = vset.pattern.permute.xlu0 0
      %1520 = vperm.xlu0 %1519, %v938
      %v1521 = vpop.permute.xlu0 %1520
      %1524 = vset.pattern.permute.xlu0 0
      %1525 = vperm.xlu0 %1524, %v953
      %v1526 = vpop.permute.xlu0 %1525
      %1529 = vset.pattern.permute.xlu0 0
      %1530 = vperm.xlu0 %1529, %v968
      %v1531 = vpop.permute.xlu0 %1530
      %1534 = vset.pattern.permute.xlu0 0
      %1535 = vperm.xlu0 %1534, %v983
      %v1536 = vpop.permute.xlu0 %1535
      %1539 = vset.pattern.permute.xlu0 0
      %1540 = vperm.xlu0 %1539, %v998
      %v1541 = vpop.permute.xlu0 %1540
      %1544 = vset.pattern.permute.xlu0 0
      %1545 = vperm.xlu0 %1544, %v1013
      %v1546 = vpop.permute.xlu0 %1545
      %1549 = vset.pattern.permute.xlu0 0
      %1550 = vperm.xlu0 %1549, %v1028
      %v1551 = vpop.permute.xlu0 %1550
      %1554 = vset.pattern.permute.xlu0 0
      %1555 = vperm.xlu0 %1554, %v1043
      %v1556 = vpop.permute.xlu0 %1555
      %1559 = vset.pattern.permute.xlu0 0
      %1560 = vperm.xlu0 %1559, %v1058
      %v1561 = vpop.permute.xlu0 %1560
      %1564 = vset.pattern.permute.xlu0 0
      %1565 = vperm.xlu0 %1564, %v1073
      %v1566 = vpop.permute.xlu0 %1565
      %1569 = vset.pattern.permute.xlu0 0
      %1570 = vperm.xlu0 %1569, %v1088
      %v1571 = vpop.permute.xlu0 %1570
      %1574 = vset.pattern.permute.xlu0 0
      %1575 = vperm.xlu0 %1574, %v1103
      %v1576 = vpop.permute.xlu0 %1575
      %1579 = vset.pattern.permute.xlu0 0
      %1580 = vperm.xlu0 %1579, %v1118
      %v1581 = vpop.permute.xlu0 %1580
      %1584 = vset.pattern.permute.xlu0 0
      %1585 = vperm.xlu0 %1584, %v1133
      %v1586 = vpop.permute.xlu0 %1585
      %1589 = vset.pattern.permute.xlu0 0
      %1590 = vperm.xlu0 %1589, %v1148
      %v1591 = vpop.permute.xlu0 %1590
      %1594 = vset.pattern.permute.xlu0 0
      %1595 = vperm.xlu0 %1594, %v1163
      %v1596 = vpop.permute.xlu0 %1595
      %1599 = vset.pattern.permute.xlu0 0
      %1600 = vperm.xlu0 %1599, %v1178
      %v1601 = vpop.permute.xlu0 %1600
      %1604 = vset.pattern.permute.xlu0 0
      %1605 = vperm.xlu0 %1604, %v1193
      %v1606 = vpop.permute.xlu0 %1605
      %1609 = vset.pattern.permute.xlu0 0
      %1610 = vperm.xlu0 %1609, %v1208
      %v1611 = vpop.permute.xlu0 %1610
      %1614 = vset.pattern.permute.xlu0 0
      %1615 = vperm.xlu0 %1614, %v1223
      %v1616 = vpop.permute.xlu0 %1615
      %1619 = vset.pattern.permute.xlu0 0
      %1620 = vperm.xlu0 %1619, %v1238
      %v1621 = vpop.permute.xlu0 %1620
      %1624 = vset.pattern.permute.xlu0 0
      %1625 = vperm.xlu0 %1624, %v1253
      %v1626 = vpop.permute.xlu0 %1625
      %1629 = vset.pattern.permute.xlu0 0
      %1630 = vperm.xlu0 %1629, %v1268
      %v1631 = vpop.permute.xlu0 %1630
      %1634 = vset.pattern.permute.xlu0 0
      %1635 = vperm.xlu0 %1634, %v1283
      %v1636 = vpop.permute.xlu0 %1635
      %1639 = vset.pattern.permute.xlu0 0
      %1640 = vperm.xlu0 %1639, %v1298
      %v1641 = vpop.permute.xlu0 %1640
      %1644 = vset.pattern.permute.xlu0 0
      %1645 = vperm.xlu0 %1644, %v1313
      %v1646 = vpop.permute.xlu0 %1645
      %1649 = vset.pattern.permute.xlu0 0
      %1650 = vperm.xlu0 %1649, %v1328
      %v1651 = vpop.permute.xlu0 %1650
      %1654 = vset.pattern.permute.xlu0 0
      %1655 = vperm.xlu0 %1654, %v1343
      %v1656 = vpop.permute.xlu0 %1655
      %1659 = vset.pattern.permute.xlu0 0
      %1660 = vperm.xlu0 %1659, %v1358
      %v1661 = vpop.permute.xlu0 %1660
      %1664 = vset.pattern.permute.xlu0 0
      %1665 = vperm.xlu0 %1664, %v1373
      %v1666 = vpop.permute.xlu0 %1665
      %v1668 = vmul.f32 %v1374, %v1461
      %v1669 = vmul.f32 %v1375, %v1461
      %v1670 = vmul.f32 %v1376, %v1466
      %v1671 = vmul.f32 %v1377, %v1466
      %v1672 = vmul.f32 %v1378, %v1471
      %v1673 = vmul.f32 %v1379, %v1471
      %v1674 = vmul.f32 %v1380, %v1476
      %v1675 = vmul.f32 %v1381, %v1476
      %v1676 = vmul.f32 %v1382, %v1481
      %v1677 = vmul.f32 %v1383, %v1481
      %v1678 = vmul.f32 %v1384, %v1486
      %v1679 = vmul.f32 %v1385, %v1486
      %v1680 = vmul.f32 %v1386, %v1491
      %v1681 = vmul.f32 %v1387, %v1491
      %v1682 = vmul.f32 %v1388, %v1496
      %v1683 = vmul.f32 %v1389, %v1496
      %v1684 = vmul.f32 %v1390, %v1501
      %v1685 = vmul.f32 %v1391, %v1501
      %v1686 = vmul.f32 %v1392, %v1506
      %v1687 = vmul.f32 %v1393, %v1506
      %v1688 = vmul.f32 %v1394, %v1511
      %v1689 = vmul.f32 %v1395, %v1511
      %v1690 = vmul.f32 %v1396, %v1516
      %v1691 = vmul.f32 %v1397, %v1516
      %v1692 = vmul.f32 %v1398, %v1521
      %v1693 = vmul.f32 %v1399, %v1521
      %v1694 = vmul.f32 %v1400, %v1526
      %v1695 = vmul.f32 %v1401, %v1526
      %v1696 = vmul.f32 %v1402, %v1531
      %v1697 = vmul.f32 %v1403, %v1531
      %v1698 = vmul.f32 %v1404, %v1536
      %v1699 = vmul.f32 %v1405, %v1536
      %v1700 = vmul.f32 %v1406, %v1541
      %v1701 = vmul.f32 %v1407, %v1541
      %v1702 = vmul.f32 %v1408, %v1546
      %v1703 = vmul.f32 %v1409, %v1546
      %v1704 = vmul.f32 %v1410, %v1551
      %v1705 = vmul.f32 %v1411, %v1551
      %v1706 = vmul.f32 %v1412, %v1556
      %v1707 = vmul.f32 %v1413, %v1556
      %v1708 = vmul.f32 %v1414, %v1561
      %v1709 = vmul.f32 %v1415, %v1561
      %v1710 = vmul.f32 %v1416, %v1566
      %v1711 = vmul.f32 %v1417, %v1566
      %v1712 = vmul.f32 %v1418, %v1571
      %v1713 = vmul.f32 %v1419, %v1571
      %v1714 = vmul.f32 %v1420, %v1576
      %v1715 = vmul.f32 %v1421, %v1576
      %v1716 = vmul.f32 %v1422, %v1581
      %v1717 = vmul.f32 %v1423, %v1581
      %v1718 = vmul.f32 %v1424, %v1586
      %v1719 = vmul.f32 %v1425, %v1586
      %v1720 = vmul.f32 %v1426, %v1591
      %v1721 = vmul.f32 %v1427, %v1591
      %v1722 = vmul.f32 %v1428, %v1596
      %v1723 = vmul.f32 %v1429, %v1596
      %v1724 = vmul.f32 %v1430, %v1601
      %v1725 = vmul.f32 %v1431, %v1601
      %v1726 = vmul.f32 %v1432, %v1606
      %v1727 = vmul.f32 %v1433, %v1606
      %v1728 = vmul.f32 %v1434, %v1611
      %v1729 = vmul.f32 %v1435, %v1611
      %v1730 = vmul.f32 %v1436, %v1616
      %v1731 = vmul.f32 %v1437, %v1616
      %v1732 = vmul.f32 %v1438, %v1621
      %v1733 = vmul.f32 %v1439, %v1621
      %v1734 = vmul.f32 %v1440, %v1626
      %v1735 = vmul.f32 %v1441, %v1626
      %v1736 = vmul.f32 %v1442, %v1631
      %v1737 = vmul.f32 %v1443, %v1631
      %v1738 = vmul.f32 %v1444, %v1636
      %v1739 = vmul.f32 %v1445, %v1636
      %v1740 = vmul.f32 %v1446, %v1641
      %v1741 = vmul.f32 %v1447, %v1641
      %v1742 = vmul.f32 %v1448, %v1646
      %v1743 = vmul.f32 %v1449, %v1646
      %v1744 = vmul.f32 %v1450, %v1651
      %v1745 = vmul.f32 %v1451, %v1651
      %v1746 = vmul.f32 %v1452, %v1656
      %v1747 = vmul.f32 %v1453, %v1656
      %v1748 = vmul.f32 %v1454, %v1661
      %v1749 = vmul.f32 %v1455, %v1661
      %v1750 = vmul.f32 %v1456, %v1666
      %v1751 = vmul.f32 %v1457, %v1666
      %v1752 = vpack.c.bf16 %v1670, %v1668
      %v1753 = vpack.c.bf16 %v1671, %v1669
      %v1754 = vpack.c.bf16 %v1674, %v1672
      %v1755 = vpack.c.bf16 %v1675, %v1673
      %v1756 = vpack.c.bf16 %v1678, %v1676
      %v1757 = vpack.c.bf16 %v1679, %v1677
      %v1758 = vpack.c.bf16 %v1682, %v1680
      %v1759 = vpack.c.bf16 %v1683, %v1681
      %v1760 = vpack.c.bf16 %v1686, %v1684
      %v1761 = vpack.c.bf16 %v1687, %v1685
      %v1762 = vpack.c.bf16 %v1690, %v1688
      %v1763 = vpack.c.bf16 %v1691, %v1689
      %v1764 = vpack.c.bf16 %v1694, %v1692
      %v1765 = vpack.c.bf16 %v1695, %v1693
      %v1766 = vpack.c.bf16 %v1698, %v1696
      %v1767 = vpack.c.bf16 %v1699, %v1697
      %v1768 = vpack.c.bf16 %v1702, %v1700
      %v1769 = vpack.c.bf16 %v1703, %v1701
      %v1770 = vpack.c.bf16 %v1706, %v1704
      %v1771 = vpack.c.bf16 %v1707, %v1705
      %v1772 = vpack.c.bf16 %v1710, %v1708
      %v1773 = vpack.c.bf16 %v1711, %v1709
      %v1774 = vpack.c.bf16 %v1714, %v1712
      %v1775 = vpack.c.bf16 %v1715, %v1713
      %v1776 = vpack.c.bf16 %v1718, %v1716
      %v1777 = vpack.c.bf16 %v1719, %v1717
      %v1778 = vpack.c.bf16 %v1722, %v1720
      %v1779 = vpack.c.bf16 %v1723, %v1721
      %v1780 = vpack.c.bf16 %v1726, %v1724
      %v1781 = vpack.c.bf16 %v1727, %v1725
      %v1782 = vpack.c.bf16 %v1730, %v1728
      %v1783 = vpack.c.bf16 %v1731, %v1729
      %v1784 = vpack.c.bf16 %v1734, %v1732
      %v1785 = vpack.c.bf16 %v1735, %v1733
      %v1786 = vpack.c.bf16 %v1738, %v1736
      %v1787 = vpack.c.bf16 %v1739, %v1737
      %v1788 = vpack.c.bf16 %v1742, %v1740
      %v1789 = vpack.c.bf16 %v1743, %v1741
      %v1790 = vpack.c.bf16 %v1746, %v1744
      %v1791 = vpack.c.bf16 %v1747, %v1745
      %v1792 = vpack.c.bf16 %v1750, %v1748
      %v1793 = vpack.c.bf16 %v1751, %v1749
      %v1794 = vld [vmem:[%s224] sm:$0xff]
      %v1795 = vld [vmem:[%s224 + $0x8] sm:$0xf]
      %v1796 = vld [vmem:[%s224 + $0xc] sm:$0xff]
      %v1797 = vld [vmem:[%s224 + $0x14] sm:$0xf]
      %v1798 = vld [vmem:[%s224 + $0x18] sm:$0xff]
      %v1799 = vld [vmem:[%s224 + $0x20] sm:$0xf]
      %v1800 = vld [vmem:[%s224 + $0x24] sm:$0xff]
      %v1801 = vld [vmem:[%s224 + $0x2c] sm:$0xf]
      %v1802 = vld [vmem:[%s224 + $0x30] sm:$0xff]
      %v1803 = vld [vmem:[%s224 + $0x38] sm:$0xf]
      %v1804 = vld [vmem:[%s224 + $0x3c] sm:$0xff]
      %v1805 = vld [vmem:[%s224 + $0x44] sm:$0xf]
      %v1806 = vld [vmem:[%s224 + $0x48] sm:$0xff]
      %v1807 = vld [vmem:[%s224 + $0x50] sm:$0xf]
      %v1808 = vld [vmem:[%s224 + $0x54] sm:$0xff]
      %v1809 = vld [vmem:[%s224 + $0x5c] sm:$0xf]
      %v1810 = vld [vmem:[%s224 + $0x60] sm:$0xff]
      %v1811 = vld [vmem:[%s224 + $0x68] sm:$0xf]
      %v1812 = vld [vmem:[%s224 + $0x6c] sm:$0xff]
      %v1813 = vld [vmem:[%s224 + $0x74] sm:$0xf]
      %v1814 = vld [vmem:[%s224 + $0x78] sm:$0xff]
      %v1815 = vld [vmem:[%s224 + $0x80] sm:$0xf]
      %v1816 = vld [vmem:[%s224 + $0x84] sm:$0xff]
      %v1817 = vld [vmem:[%s224 + $0x8c] sm:$0xf]
      %v1818 = vld [vmem:[%s224 + $0x90] sm:$0xff]
      %v1819 = vld [vmem:[%s224 + $0x98] sm:$0xf]
      %v1820 = vld [vmem:[%s224 + $0x9c] sm:$0xff]
      %v1821 = vld [vmem:[%s224 + $0xa4] sm:$0xf]
      %v1822 = vld [vmem:[%s224 + $0xa8] sm:$0xff]
      %v1823 = vld [vmem:[%s224 + $0xb0] sm:$0xf]
      %v1824 = vld [vmem:[%s224 + $0xb4] sm:$0xff]
      %v1825 = vld [vmem:[%s224 + $0xbc] sm:$0xf]
      %v1826 = vld [vmem:[%s224 + $0xc0] sm:$0xff]
      %v1827 = vld [vmem:[%s224 + $0xc8] sm:$0xf]
      %v1828 = vld [vmem:[%s224 + $0xcc] sm:$0xff]
      %v1829 = vld [vmem:[%s224 + $0xd4] sm:$0xf]
      %v1830 = vld [vmem:[%s224 + $0xd8] sm:$0xff]
      %v1831 = vld [vmem:[%s224 + $0xe0] sm:$0xf]
      %v1832 = vld [vmem:[%s224 + $0xe4] sm:$0xff]
      %v1833 = vld [vmem:[%s224 + $0xec] sm:$0xf]
      %v1834 = vld [vmem:[%s224 + $0xf0] sm:$0xff]
      %v1835 = vld [vmem:[%s224 + $0xf8] sm:$0xf]
      %v1878 = vunpack.c.l.b16 %v1794
      %v1879 = vunpack.c.h.b16 %v1794
      %v1880 = vunpack.c.l.b16 %v1795
      %v1881 = vunpack.c.l.b16 %v1796
      %v1882 = vunpack.c.h.b16 %v1796
      %v1883 = vunpack.c.l.b16 %v1797
      %v1884 = vunpack.c.l.b16 %v1798
      %v1885 = vunpack.c.h.b16 %v1798
      %v1886 = vunpack.c.l.b16 %v1799
      %v1887 = vunpack.c.l.b16 %v1800
      %v1888 = vunpack.c.h.b16 %v1800
      %v1889 = vunpack.c.l.b16 %v1801
      %v1890 = vunpack.c.l.b16 %v1802
      %v1891 = vunpack.c.h.b16 %v1802
      %v1892 = vunpack.c.l.b16 %v1803
      %v1893 = vunpack.c.l.b16 %v1804
      %v1894 = vunpack.c.h.b16 %v1804
      %v1895 = vunpack.c.l.b16 %v1805
      %v1896 = vunpack.c.l.b16 %v1806
      %v1897 = vunpack.c.h.b16 %v1806
      %v1898 = vunpack.c.l.b16 %v1807
      %v1899 = vunpack.c.l.b16 %v1808
      %v1900 = vunpack.c.h.b16 %v1808
      %v1901 = vunpack.c.l.b16 %v1809
      %v1902 = vunpack.c.l.b16 %v1810
      %v1903 = vunpack.c.h.b16 %v1810
      %v1904 = vunpack.c.l.b16 %v1811
      %v1905 = vunpack.c.l.b16 %v1812
      %v1906 = vunpack.c.h.b16 %v1812
      %v1907 = vunpack.c.l.b16 %v1813
      %v1908 = vunpack.c.l.b16 %v1814
      %v1909 = vunpack.c.h.b16 %v1814
      %v1910 = vunpack.c.l.b16 %v1815
      %v1911 = vunpack.c.l.b16 %v1816
      %v1912 = vunpack.c.h.b16 %v1816
      %v1913 = vunpack.c.l.b16 %v1817
      %v1914 = vunpack.c.l.b16 %v1818
      %v1915 = vunpack.c.h.b16 %v1818
      %v1916 = vunpack.c.l.b16 %v1819
      %v1917 = vunpack.c.l.b16 %v1820
      %v1918 = vunpack.c.h.b16 %v1820
      %v1919 = vunpack.c.l.b16 %v1821
      %v1920 = vunpack.c.l.b16 %v1822
      %v1921 = vunpack.c.h.b16 %v1822
      %v1922 = vunpack.c.l.b16 %v1823
      %v1923 = vunpack.c.l.b16 %v1824
      %v1924 = vunpack.c.h.b16 %v1824
      %v1925 = vunpack.c.l.b16 %v1825
      %v1926 = vunpack.c.l.b16 %v1826
      %v1927 = vunpack.c.h.b16 %v1826
      %v1928 = vunpack.c.l.b16 %v1827
      %v1929 = vunpack.c.l.b16 %v1828
      %v1930 = vunpack.c.h.b16 %v1828
      %v1931 = vunpack.c.l.b16 %v1829
      %v1932 = vunpack.c.l.b16 %v1830
      %v1933 = vunpack.c.h.b16 %v1830
      %v1934 = vunpack.c.l.b16 %v1831
      %v1935 = vunpack.c.l.b16 %v1832
      %v1936 = vunpack.c.h.b16 %v1832
      %v1937 = vunpack.c.l.b16 %v1833
      %v1938 = vunpack.c.l.b16 %v1834
      %v1939 = vunpack.c.h.b16 %v1834
      %v1940 = vunpack.c.l.b16 %v1835
      %v1941 = vpack.c.b16 %v1881, %v1878
      %v1942 = vpack.c.b16 %v1882, %v1879
      %v1943 = vpack.c.b16 %v1883, %v1880
      %v1944 = vpack.c.b16 %v1887, %v1884
      %v1945 = vpack.c.b16 %v1888, %v1885
      %v1946 = vpack.c.b16 %v1889, %v1886
      %v1947 = vpack.c.b16 %v1893, %v1890
      %v1948 = vpack.c.b16 %v1894, %v1891
      %v1949 = vpack.c.b16 %v1895, %v1892
      %v1950 = vpack.c.b16 %v1899, %v1896
      %v1951 = vpack.c.b16 %v1900, %v1897
      %v1952 = vpack.c.b16 %v1901, %v1898
      %v1953 = vpack.c.b16 %v1905, %v1902
      %v1954 = vpack.c.b16 %v1906, %v1903
      %v1955 = vpack.c.b16 %v1907, %v1904
      %v1956 = vpack.c.b16 %v1911, %v1908
      %v1957 = vpack.c.b16 %v1912, %v1909
      %v1958 = vpack.c.b16 %v1913, %v1910
      %v1959 = vpack.c.b16 %v1917, %v1914
      %v1960 = vpack.c.b16 %v1918, %v1915
      %v1961 = vpack.c.b16 %v1919, %v1916
      %v1962 = vpack.c.b16 %v1923, %v1920
      %v1963 = vpack.c.b16 %v1924, %v1921
      %v1964 = vpack.c.b16 %v1925, %v1922
      %v1965 = vpack.c.b16 %v1929, %v1926
      %v1966 = vpack.c.b16 %v1930, %v1927
      %v1967 = vpack.c.b16 %v1931, %v1928
      %v1968 = vpack.c.b16 %v1935, %v1932
      %v1969 = vpack.c.b16 %v1936, %v1933
      %v1970 = vpack.c.b16 %v1937, %v1934
      %v1971 = vpack.c.b16 %v1938, %v1938
      %v1972 = vpack.c.b16 %v1939, %v1939
      %v1973 = vpack.c.b16 %v1940, %v1940
      %vm1996 = vcmask 654336
      %v1998 = vsel %vm1996, %v1943, 0
      %v2001 = vsel %vm1996, %v1946, 0
      %v2004 = vsel %vm1996, %v1949, 0
      %v2007 = vsel %vm1996, %v1952, 0
      %v2010 = vsel %vm1996, %v1955, 0
      %v2013 = vsel %vm1996, %v1958, 0
      %v2016 = vsel %vm1996, %v1961, 0
      %v2019 = vsel %vm1996, %v1964, 0
      %v2022 = vsel %vm1996, %v1967, 0
      %v2025 = vsel %vm1996, %v1970, 0
      %v2028 = vsel %vm1996, %v1973, 0
      %2030 = vmatpush.bf16.msra.mxu0 %v1766
      %2031 = vmatpush.bf16.msra.mxu0 %v1764
      %2032 = vmatpush.bf16.msra.mxu0 %v1762
      %2033 = vmatpush.bf16.msra.mxu0 %v1760
      %2034 = vmatpush.bf16.msra.mxu0 %v1758
      %2035 = vmatpush.bf16.msra.mxu0 %v1756
      %2036 = vmatpush.bf16.msra.mxu0 %v1754
      %2037 = vmatpush.bf16.msra.mxu0 %v1752
      %2038 = vmatmul.bf16.gmra.mxu0 %v1941
      %v2039 = vpop.f32.mrf.mxu0
      %v2040 = vadd.f32 0.0, %v2039
      %v2041 = vpop.f32.mrf.mxu0
      %v2042 = vadd.f32 0.0, %v2041
      %2043 = vmatmul.bf16.gmra.mxu0 %v1944
      %v2044 = vpop.f32.mrf.mxu0
      %v2045 = vadd.f32 0.0, %v2044
      %v2046 = vpop.f32.mrf.mxu0
      %v2047 = vadd.f32 0.0, %v2046
      %2048 = vmatmul.bf16.gmra.mxu0 %v1947
      %v2049 = vpop.f32.mrf.mxu0
      %v2050 = vadd.f32 0.0, %v2049
      %v2051 = vpop.f32.mrf.mxu0
      %v2052 = vadd.f32 0.0, %v2051
      %2053 = vmatmul.bf16.gmra.mxu0 %v1950
      %v2054 = vpop.f32.mrf.mxu0
      %v2055 = vadd.f32 0.0, %v2054
      %v2056 = vpop.f32.mrf.mxu0
      %v2057 = vadd.f32 0.0, %v2056
      %2058 = vmatmul.bf16.gmra.mxu0 %v1953
      %v2059 = vpop.f32.mrf.mxu0
      %v2060 = vadd.f32 0.0, %v2059
      %v2061 = vpop.f32.mrf.mxu0
      %v2062 = vadd.f32 0.0, %v2061
      %2063 = vmatmul.bf16.gmra.mxu0 %v1956
      %v2064 = vpop.f32.mrf.mxu0
      %v2065 = vadd.f32 0.0, %v2064
      %v2066 = vpop.f32.mrf.mxu0
      %v2067 = vadd.f32 0.0, %v2066
      %2068 = vmatmul.bf16.gmra.mxu0 %v1959
      %v2069 = vpop.f32.mrf.mxu0
      %v2070 = vadd.f32 0.0, %v2069
      %v2071 = vpop.f32.mrf.mxu0
      %v2072 = vadd.f32 0.0, %v2071
      %2073 = vmatmul.bf16.gmra.mxu0 %v1962
      %v2074 = vpop.f32.mrf.mxu0
      %v2075 = vadd.f32 0.0, %v2074
      %v2076 = vpop.f32.mrf.mxu0
      %v2077 = vadd.f32 0.0, %v2076
      %2078 = vmatmul.bf16.gmra.mxu0 %v1965
      %v2079 = vpop.f32.mrf.mxu0
      %v2080 = vadd.f32 0.0, %v2079
      %v2081 = vpop.f32.mrf.mxu0
      %v2082 = vadd.f32 0.0, %v2081
      %2083 = vmatmul.bf16.gmra.mxu0 %v1968
      %v2084 = vpop.f32.mrf.mxu0
      %v2085 = vadd.f32 0.0, %v2084
      %v2086 = vpop.f32.mrf.mxu0
      %v2087 = vadd.f32 0.0, %v2086
      %2088 = vmatmul.bf16.gmra.mxu0 %v1971
      %v2089 = vpop.f32.mrf.mxu0
      %v2090 = vadd.f32 0.0, %v2089
      %v2091 = vpop.f32.mrf.mxu0
      %2092 = vdwg.mxu0
      %2093 = vmatpush.bf16.msra.mxu0 %v1782
      %2094 = vmatpush.bf16.msra.mxu0 %v1780
      %2095 = vmatpush.bf16.msra.mxu0 %v1778
      %2096 = vmatpush.bf16.msra.mxu0 %v1776
      %2097 = vmatpush.bf16.msra.mxu0 %v1774
      %2098 = vmatpush.bf16.msra.mxu0 %v1772
      %2099 = vmatpush.bf16.msra.mxu0 %v1770
      %2100 = vmatpush.bf16.msra.mxu0 %v1768
      %2101 = vmatmul.bf16.gmra.mxu0 %v1942
      %v2102 = vpop.f32.mrf.mxu0
      %v2103 = vadd.f32 %v2040, %v2102
      %v2104 = vpop.f32.mrf.mxu0
      %v2105 = vadd.f32 %v2042, %v2104
      %2106 = vmatmul.bf16.gmra.mxu0 %v1945
      %v2107 = vpop.f32.mrf.mxu0
      %v2108 = vadd.f32 %v2045, %v2107
      %v2109 = vpop.f32.mrf.mxu0
      %v2110 = vadd.f32 %v2047, %v2109
      %2111 = vmatmul.bf16.gmra.mxu0 %v1948
      %v2112 = vpop.f32.mrf.mxu0
      %v2113 = vadd.f32 %v2050, %v2112
      %v2114 = vpop.f32.mrf.mxu0
      %v2115 = vadd.f32 %v2052, %v2114
      %2116 = vmatmul.bf16.gmra.mxu0 %v1951
      %v2117 = vpop.f32.mrf.mxu0
      %v2118 = vadd.f32 %v2055, %v2117
      %v2119 = vpop.f32.mrf.mxu0
      %v2120 = vadd.f32 %v2057, %v2119
      %2121 = vmatmul.bf16.gmra.mxu0 %v1954
      %v2122 = vpop.f32.mrf.mxu0
      %v2123 = vadd.f32 %v2060, %v2122
      %v2124 = vpop.f32.mrf.mxu0
      %v2125 = vadd.f32 %v2062, %v2124
      %2126 = vmatmul.bf16.gmra.mxu0 %v1957
      %v2127 = vpop.f32.mrf.mxu0
      %v2128 = vadd.f32 %v2065, %v2127
      %v2129 = vpop.f32.mrf.mxu0
      %v2130 = vadd.f32 %v2067, %v2129
      %2131 = vmatmul.bf16.gmra.mxu0 %v1960
      %v2132 = vpop.f32.mrf.mxu0
      %v2133 = vadd.f32 %v2070, %v2132
      %v2134 = vpop.f32.mrf.mxu0
      %v2135 = vadd.f32 %v2072, %v2134
      %2136 = vmatmul.bf16.gmra.mxu0 %v1963
      %v2137 = vpop.f32.mrf.mxu0
      %v2138 = vadd.f32 %v2075, %v2137
      %v2139 = vpop.f32.mrf.mxu0
      %v2140 = vadd.f32 %v2077, %v2139
      %2141 = vmatmul.bf16.gmra.mxu0 %v1966
      %v2142 = vpop.f32.mrf.mxu0
      %v2143 = vadd.f32 %v2080, %v2142
      %v2144 = vpop.f32.mrf.mxu0
      %v2145 = vadd.f32 %v2082, %v2144
      %2146 = vmatmul.bf16.gmra.mxu0 %v1969
      %v2147 = vpop.f32.mrf.mxu0
      %v2148 = vadd.f32 %v2085, %v2147
      %v2149 = vpop.f32.mrf.mxu0
      %v2150 = vadd.f32 %v2087, %v2149
      %2151 = vmatmul.bf16.gmra.mxu0 %v1972
      %v2152 = vpop.f32.mrf.mxu0
      %v2153 = vadd.f32 %v2090, %v2152
      %v2154 = vpop.f32.mrf.mxu0
      %2155 = vdwg.mxu0
      %2156 = vmatpush.bf16.msra.mxu0 0
      %2157 = vmatpush.bf16.msra.mxu0 0
      %2158 = vmatpush.bf16.msra.mxu0 0
      %2159 = vmatpush.bf16.msra.mxu0 %v1792
      %2160 = vmatpush.bf16.msra.mxu0 %v1790
      %2161 = vmatpush.bf16.msra.mxu0 %v1788
      %2162 = vmatpush.bf16.msra.mxu0 %v1786
      %2163 = vmatpush.bf16.msra.mxu0 %v1784
      %2164 = vmatmul.bf16.gmra.mxu0 %v1998
      %v2165 = vpop.f32.mrf.mxu0
      %v2166 = vadd.f32 %v2103, %v2165
      %v2167 = vpop.f32.mrf.mxu0
      %v2168 = vadd.f32 %v2105, %v2167
      %2169 = vmatmul.bf16.gmra.mxu0 %v2001
      %v2170 = vpop.f32.mrf.mxu0
      %v2171 = vadd.f32 %v2108, %v2170
      %v2172 = vpop.f32.mrf.mxu0
      %v2173 = vadd.f32 %v2110, %v2172
      %2174 = vmatmul.bf16.gmra.mxu0 %v2004
      %v2175 = vpop.f32.mrf.mxu0
      %v2176 = vadd.f32 %v2113, %v2175
      %v2177 = vpop.f32.mrf.mxu0
      %v2178 = vadd.f32 %v2115, %v2177
      %2179 = vmatmul.bf16.gmra.mxu0 %v2007
      %v2180 = vpop.f32.mrf.mxu0
      %v2181 = vadd.f32 %v2118, %v2180
      %v2182 = vpop.f32.mrf.mxu0
      %v2183 = vadd.f32 %v2120, %v2182
      %2184 = vmatmul.bf16.gmra.mxu0 %v2010
      %v2185 = vpop.f32.mrf.mxu0
      %v2186 = vadd.f32 %v2123, %v2185
      %v2187 = vpop.f32.mrf.mxu0
      %v2188 = vadd.f32 %v2125, %v2187
      %2189 = vmatmul.bf16.gmra.mxu0 %v2013
      %v2190 = vpop.f32.mrf.mxu0
      %v2191 = vadd.f32 %v2128, %v2190
      %v2192 = vpop.f32.mrf.mxu0
      %v2193 = vadd.f32 %v2130, %v2192
      %2194 = vmatmul.bf16.gmra.mxu0 %v2016
      %v2195 = vpop.f32.mrf.mxu0
      %v2196 = vadd.f32 %v2133, %v2195
      %v2197 = vpop.f32.mrf.mxu0
      %v2198 = vadd.f32 %v2135, %v2197
      %2199 = vmatmul.bf16.gmra.mxu0 %v2019
      %v2200 = vpop.f32.mrf.mxu0
      %v2201 = vadd.f32 %v2138, %v2200
      %v2202 = vpop.f32.mrf.mxu0
      %v2203 = vadd.f32 %v2140, %v2202
      %2204 = vmatmul.bf16.gmra.mxu0 %v2022
      %v2205 = vpop.f32.mrf.mxu0
      %v2206 = vadd.f32 %v2143, %v2205
      %v2207 = vpop.f32.mrf.mxu0
      %v2208 = vadd.f32 %v2145, %v2207
      %2209 = vmatmul.bf16.gmra.mxu0 %v2025
      %v2210 = vpop.f32.mrf.mxu0
      %v2211 = vadd.f32 %v2148, %v2210
      %v2212 = vpop.f32.mrf.mxu0
      %v2213 = vadd.f32 %v2150, %v2212
      %2214 = vmatmul.bf16.gmra.mxu0 %v2028
      %v2215 = vpop.f32.mrf.mxu0
      %v2216 = vadd.f32 %v2153, %v2215
      %v2217 = vpop.f32.mrf.mxu0
      %2218 = vdwg.mxu0
      %2219 = vmatpush.bf16.msra.mxu0 %v1767
      %2220 = vmatpush.bf16.msra.mxu0 %v1765
      %2221 = vmatpush.bf16.msra.mxu0 %v1763
      %2222 = vmatpush.bf16.msra.mxu0 %v1761
      %2223 = vmatpush.bf16.msra.mxu0 %v1759
      %2224 = vmatpush.bf16.msra.mxu0 %v1757
      %2225 = vmatpush.bf16.msra.mxu0 %v1755
      %2226 = vmatpush.bf16.msra.mxu0 %v1753
      %2227 = vmatmul.bf16.gmra.mxu0 %v1941
      %v2228 = vpop.f32.mrf.mxu0
      %v2229 = vadd.f32 0.0, %v2228
      %v2230 = vpop.f32.mrf.mxu0
      %v2231 = vadd.f32 0.0, %v2230
      %2232 = vmatmul.bf16.gmra.mxu0 %v1944
      %v2233 = vpop.f32.mrf.mxu0
      %v2234 = vadd.f32 0.0, %v2233
      %v2235 = vpop.f32.mrf.mxu0
      %v2236 = vadd.f32 0.0, %v2235
      %2237 = vmatmul.bf16.gmra.mxu0 %v1947
      %v2238 = vpop.f32.mrf.mxu0
      %v2239 = vadd.f32 0.0, %v2238
      %v2240 = vpop.f32.mrf.mxu0
      %v2241 = vadd.f32 0.0, %v2240
      %2242 = vmatmul.bf16.gmra.mxu0 %v1950
      %v2243 = vpop.f32.mrf.mxu0
      %v2244 = vadd.f32 0.0, %v2243
      %v2245 = vpop.f32.mrf.mxu0
      %v2246 = vadd.f32 0.0, %v2245
      %2247 = vmatmul.bf16.gmra.mxu0 %v1953
      %v2248 = vpop.f32.mrf.mxu0
      %v2249 = vadd.f32 0.0, %v2248
      %v2250 = vpop.f32.mrf.mxu0
      %v2251 = vadd.f32 0.0, %v2250
      %2252 = vmatmul.bf16.gmra.mxu0 %v1956
      %v2253 = vpop.f32.mrf.mxu0
      %v2254 = vadd.f32 0.0, %v2253
      %v2255 = vpop.f32.mrf.mxu0
      %v2256 = vadd.f32 0.0, %v2255
      %2257 = vmatmul.bf16.gmra.mxu0 %v1959
      %v2258 = vpop.f32.mrf.mxu0
      %v2259 = vadd.f32 0.0, %v2258
      %v2260 = vpop.f32.mrf.mxu0
      %v2261 = vadd.f32 0.0, %v2260
      %2262 = vmatmul.bf16.gmra.mxu0 %v1962
      %v2263 = vpop.f32.mrf.mxu0
      %v2264 = vadd.f32 0.0, %v2263
      %v2265 = vpop.f32.mrf.mxu0
      %v2266 = vadd.f32 0.0, %v2265
      %2267 = vmatmul.bf16.gmra.mxu0 %v1965
      %v2268 = vpop.f32.mrf.mxu0
      %v2269 = vadd.f32 0.0, %v2268
      %v2270 = vpop.f32.mrf.mxu0
      %v2271 = vadd.f32 0.0, %v2270
      %2272 = vmatmul.bf16.gmra.mxu0 %v1968
      %v2273 = vpop.f32.mrf.mxu0
      %v2274 = vadd.f32 0.0, %v2273
      %v2275 = vpop.f32.mrf.mxu0
      %v2276 = vadd.f32 0.0, %v2275
      %2277 = vmatmul.bf16.gmra.mxu0 %v1971
      %v2278 = vpop.f32.mrf.mxu0
      %v2279 = vadd.f32 0.0, %v2278
      %v2280 = vpop.f32.mrf.mxu0
      %2281 = vdwg.mxu0
      %2282 = vmatpush.bf16.msra.mxu0 %v1783
      %2283 = vmatpush.bf16.msra.mxu0 %v1781
      %2284 = vmatpush.bf16.msra.mxu0 %v1779
      %2285 = vmatpush.bf16.msra.mxu0 %v1777
      %2286 = vmatpush.bf16.msra.mxu0 %v1775
      %2287 = vmatpush.bf16.msra.mxu0 %v1773
      %2288 = vmatpush.bf16.msra.mxu0 %v1771
      %2289 = vmatpush.bf16.msra.mxu0 %v1769
      %2290 = vmatmul.bf16.gmra.mxu0 %v1942
      %v2291 = vpop.f32.mrf.mxu0
      %v2292 = vadd.f32 %v2229, %v2291
      %v2293 = vpop.f32.mrf.mxu0
      %v2294 = vadd.f32 %v2231, %v2293
      %2295 = vmatmul.bf16.gmra.mxu0 %v1945
      %v2296 = vpop.f32.mrf.mxu0
      %v2297 = vadd.f32 %v2234, %v2296
      %v2298 = vpop.f32.mrf.mxu0
      %v2299 = vadd.f32 %v2236, %v2298
      %2300 = vmatmul.bf16.gmra.mxu0 %v1948
      %v2301 = vpop.f32.mrf.mxu0
      %v2302 = vadd.f32 %v2239, %v2301
      %v2303 = vpop.f32.mrf.mxu0
      %v2304 = vadd.f32 %v2241, %v2303
      %2305 = vmatmul.bf16.gmra.mxu0 %v1951
      %v2306 = vpop.f32.mrf.mxu0
      %v2307 = vadd.f32 %v2244, %v2306
      %v2308 = vpop.f32.mrf.mxu0
      %v2309 = vadd.f32 %v2246, %v2308
      %2310 = vmatmul.bf16.gmra.mxu0 %v1954
      %v2311 = vpop.f32.mrf.mxu0
      %v2312 = vadd.f32 %v2249, %v2311
      %v2313 = vpop.f32.mrf.mxu0
      %v2314 = vadd.f32 %v2251, %v2313
      %2315 = vmatmul.bf16.gmra.mxu0 %v1957
      %v2316 = vpop.f32.mrf.mxu0
      %v2317 = vadd.f32 %v2254, %v2316
      %v2318 = vpop.f32.mrf.mxu0
      %v2319 = vadd.f32 %v2256, %v2318
      %2320 = vmatmul.bf16.gmra.mxu0 %v1960
      %v2321 = vpop.f32.mrf.mxu0
      %v2322 = vadd.f32 %v2259, %v2321
      %v2323 = vpop.f32.mrf.mxu0
      %v2324 = vadd.f32 %v2261, %v2323
      %2325 = vmatmul.bf16.gmra.mxu0 %v1963
      %v2326 = vpop.f32.mrf.mxu0
      %v2327 = vadd.f32 %v2264, %v2326
      %v2328 = vpop.f32.mrf.mxu0
      %v2329 = vadd.f32 %v2266, %v2328
      %2330 = vmatmul.bf16.gmra.mxu0 %v1966
      %v2331 = vpop.f32.mrf.mxu0
      %v2332 = vadd.f32 %v2269, %v2331
      %v2333 = vpop.f32.mrf.mxu0
      %v2334 = vadd.f32 %v2271, %v2333
      %2335 = vmatmul.bf16.gmra.mxu0 %v1969
      %v2336 = vpop.f32.mrf.mxu0
      %v2337 = vadd.f32 %v2274, %v2336
      %v2338 = vpop.f32.mrf.mxu0
      %v2339 = vadd.f32 %v2276, %v2338
      %2340 = vmatmul.bf16.gmra.mxu0 %v1972
      %v2341 = vpop.f32.mrf.mxu0
      %v2342 = vadd.f32 %v2279, %v2341
      %v2343 = vpop.f32.mrf.mxu0
      %2344 = vdwg.mxu0
      %2345 = vmatpush.bf16.msra.mxu0 0
      %2346 = vmatpush.bf16.msra.mxu0 0
      %2347 = vmatpush.bf16.msra.mxu0 0
      %2348 = vmatpush.bf16.msra.mxu0 %v1793
      %2349 = vmatpush.bf16.msra.mxu0 %v1791
      %2350 = vmatpush.bf16.msra.mxu0 %v1789
      %2351 = vmatpush.bf16.msra.mxu0 %v1787
      %2352 = vmatpush.bf16.msra.mxu0 %v1785
      %2353 = vmatmul.bf16.gmra.mxu0 %v1998
      %v2354 = vpop.f32.mrf.mxu0
      %v2355 = vadd.f32 %v2292, %v2354
      %v2356 = vpop.f32.mrf.mxu0
      %v2357 = vadd.f32 %v2294, %v2356
      %2358 = vmatmul.bf16.gmra.mxu0 %v2001
      %v2359 = vpop.f32.mrf.mxu0
      %v2360 = vadd.f32 %v2297, %v2359
      %v2361 = vpop.f32.mrf.mxu0
      %v2362 = vadd.f32 %v2299, %v2361
      %2363 = vmatmul.bf16.gmra.mxu0 %v2004
      %v2364 = vpop.f32.mrf.mxu0
      %v2365 = vadd.f32 %v2302, %v2364
      %v2366 = vpop.f32.mrf.mxu0
      %v2367 = vadd.f32 %v2304, %v2366
      %2368 = vmatmul.bf16.gmra.mxu0 %v2007
      %v2369 = vpop.f32.mrf.mxu0
      %v2370 = vadd.f32 %v2307, %v2369
      %v2371 = vpop.f32.mrf.mxu0
      %v2372 = vadd.f32 %v2309, %v2371
      %2373 = vmatmul.bf16.gmra.mxu0 %v2010
      %v2374 = vpop.f32.mrf.mxu0
      %v2375 = vadd.f32 %v2312, %v2374
      %v2376 = vpop.f32.mrf.mxu0
      %v2377 = vadd.f32 %v2314, %v2376
      %2378 = vmatmul.bf16.gmra.mxu0 %v2013
      %v2379 = vpop.f32.mrf.mxu0
      %v2380 = vadd.f32 %v2317, %v2379
      %v2381 = vpop.f32.mrf.mxu0
      %v2382 = vadd.f32 %v2319, %v2381
      %2383 = vmatmul.bf16.gmra.mxu0 %v2016
      %v2384 = vpop.f32.mrf.mxu0
      %v2385 = vadd.f32 %v2322, %v2384
      %v2386 = vpop.f32.mrf.mxu0
      %v2387 = vadd.f32 %v2324, %v2386
      %2388 = vmatmul.bf16.gmra.mxu0 %v2019
      %v2389 = vpop.f32.mrf.mxu0
      %v2390 = vadd.f32 %v2327, %v2389
      %v2391 = vpop.f32.mrf.mxu0
      %v2392 = vadd.f32 %v2329, %v2391
      %2393 = vmatmul.bf16.gmra.mxu0 %v2022
      %v2394 = vpop.f32.mrf.mxu0
      %v2395 = vadd.f32 %v2332, %v2394
      %v2396 = vpop.f32.mrf.mxu0
      %v2397 = vadd.f32 %v2334, %v2396
      %2398 = vmatmul.bf16.gmra.mxu0 %v2025
      %v2399 = vpop.f32.mrf.mxu0
      %v2400 = vadd.f32 %v2337, %v2399
      %v2401 = vpop.f32.mrf.mxu0
      %v2402 = vadd.f32 %v2339, %v2401
      %2403 = vmatmul.bf16.gmra.mxu0 %v2028
      %v2404 = vpop.f32.mrf.mxu0
      %v2405 = vadd.f32 %v2342, %v2404
      %v2406 = vpop.f32.mrf.mxu0
      %2407 = vdwg.mxu0
      %2408 = vst [vmem:[%s231] sm:$0xff] %v2166
      %vm2409 = vcmask 556032
      %2410 = vst.msk [vmem:[%s231 + $0x8] sm:$0xff] %vm2409, %v2355
      %2411 = vst [vmem:[%s231 + $0x10] sm:$0xff] %v2168
      %2412 = vst.msk [vmem:[%s231 + $0x18] sm:$0xff] %vm2409, %v2357
      %2413 = vst [vmem:[%s231 + $0x20] sm:$0xff] %v2171
      %2414 = vst.msk [vmem:[%s231 + $0x28] sm:$0xff] %vm2409, %v2360
      %2415 = vst [vmem:[%s231 + $0x30] sm:$0xff] %v2173
      %2416 = vst.msk [vmem:[%s231 + $0x38] sm:$0xff] %vm2409, %v2362
      %2417 = vst [vmem:[%s231 + $0x40] sm:$0xff] %v2176
      %2418 = vst.msk [vmem:[%s231 + $0x48] sm:$0xff] %vm2409, %v2365
      %2419 = vst [vmem:[%s231 + $0x50] sm:$0xff] %v2178
      %2420 = vst.msk [vmem:[%s231 + $0x58] sm:$0xff] %vm2409, %v2367
      %2421 = vst [vmem:[%s231 + $0x60] sm:$0xff] %v2181
      %2422 = vst.msk [vmem:[%s231 + $0x68] sm:$0xff] %vm2409, %v2370
      %2423 = vst [vmem:[%s231 + $0x70] sm:$0xff] %v2183
      %2424 = vst.msk [vmem:[%s231 + $0x78] sm:$0xff] %vm2409, %v2372
      %2425 = vst [vmem:[%s231 + $0x80] sm:$0xff] %v2186
      %2426 = vst.msk [vmem:[%s231 + $0x88] sm:$0xff] %vm2409, %v2375
      %2427 = vst [vmem:[%s231 + $0x90] sm:$0xff] %v2188
      %2428 = vst.msk [vmem:[%s231 + $0x98] sm:$0xff] %vm2409, %v2377
      %2429 = vst [vmem:[%s231 + $0xa0] sm:$0xff] %v2191
      %2430 = vst.msk [vmem:[%s231 + $0xa8] sm:$0xff] %vm2409, %v2380
      %2431 = vst [vmem:[%s231 + $0xb0] sm:$0xff] %v2193
      %2432 = vst.msk [vmem:[%s231 + $0xb8] sm:$0xff] %vm2409, %v2382
      %2433 = vst [vmem:[%s231 + $0xc0] sm:$0xff] %v2196
      %2434 = vst.msk [vmem:[%s231 + $0xc8] sm:$0xff] %vm2409, %v2385
      %2435 = vst [vmem:[%s231 + $0xd0] sm:$0xff] %v2198
      %2436 = vst.msk [vmem:[%s231 + $0xd8] sm:$0xff] %vm2409, %v2387
      %2437 = vst [vmem:[%s231 + $0xe0] sm:$0xff] %v2201
      %2438 = vst.msk [vmem:[%s231 + $0xe8] sm:$0xff] %vm2409, %v2390
      %2439 = vst [vmem:[%s231 + $0xf0] sm:$0xff] %v2203
      %2440 = vst.msk [vmem:[%s231 + $0xf8] sm:$0xff] %vm2409, %v2392
      %2441 = vst [vmem:[%s231 + $0x100] sm:$0xff] %v2206
      %2442 = vst.msk [vmem:[%s231 + $0x108] sm:$0xff] %vm2409, %v2395
      %2443 = vst [vmem:[%s231 + $0x110] sm:$0xff] %v2208
      %2444 = vst.msk [vmem:[%s231 + $0x118] sm:$0xff] %vm2409, %v2397
      %2445 = vst [vmem:[%s231 + $0x120] sm:$0xff] %v2211
      %2446 = vst.msk [vmem:[%s231 + $0x128] sm:$0xff] %vm2409, %v2400
      %2447 = vst [vmem:[%s231 + $0x130] sm:$0xff] %v2213
      %2448 = vst.msk [vmem:[%s231 + $0x138] sm:$0xff] %vm2409, %v2402
      %2449 = vst [vmem:[%s231 + $0x140] sm:$0xff] %v2216
      %2450 = vst.msk [vmem:[%s231 + $0x148] sm:$0xff] %vm2409, %v2405
      %s2451 = smul.u32 21, %s16
      %p2452 = scmp.lt.s32.totalorder %s2451, 41
      %s2453 = scalar_select %p2452, %s2451, 41
      %s2454 = smul.addr %s2453, 2
      %s2455 = smul.addr %s2454, 8
      %s2456 = scalar_lea.vmem %s5, %s2455
      // Predicated region
      $region41: #{se_block.1} parent=39 // pred_check
        %p2457 = pneg %p144
      $region42: #{se_block.1} parent=39 // pred_check_branch
        %2459 = sbr.rel (%p2457) target = $region44
      $region43: #{se_block.1} parent=39 // pred_region
        %s2460 = smul.u32 21, %s16
      $region44: #{se_block.1} parent=39 // pred_fallthru
        _
    $region40: #{se_block.1} parent=5 // pred_fallthru
      _
    %p2461 = scmp.le.s32.totalorder 2, %s11
    // Predicated region
    $region45: #{se_block.1} parent=5 // pred_check
      %p2462 = pneg %p2461
    $region46: #{se_block.1} parent=5 // pred_check_branch
      %2464 = sbr.rel (%p2462) target = $region48
    $region47: #{se_block.1} parent=5 // pred_region
      %s2465 = ssub.s32 %s11, 2
      // Predicated region
      $region49: #{se_block.1} parent=47 // pred_check
        %p2466 = pneg %p150
      $region50: #{se_block.1} parent=47 // pred_check_branch
        %2468 = sbr.rel (%p2466) target = $region52
      $region51: #{se_block.1} parent=47 // pred_region
        %s2469 = smul.u32 21, %s17
        %p2470 = scmp.lt.s32.totalorder %s2469, 41
        %s2471 = scalar_select %p2470, %s2469, 41
        %s2472 = smul.addr %s2471, 2
        %s2473 = smul.addr %s2472, 8
        %s2474 = scalar_lea.vmem %s5, %s2473
      $region52: #{se_block.1} parent=47 // pred_fallthru
        _
    $region48: #{se_block.1} parent=5 // pred_fallthru
      _
  $region6: #{se_block.1} parent=0 // loop_footer
    %s15 = sadd.s32 1, %s11
  $region7: #{se_block.1} parent=0 // loop_footer_branch
    %10 = sbr.rel target = $region3
  $region8: #{se_block.1} parent=0 // loop_exit
    _

</llo_original>
